<compile_context>
chip_gen: v5e
topology: v5e:2x2
jax: 0.10.0
libtpu: 0.0.40
codegen_flags: <defaults>
</compile_context>

<pallas_src>
import functools

import jax
import jax.numpy as jnp
from jax import lax
from jax.experimental import pallas as pl
from jax.experimental.pallas import tpu as pltpu

INLIER_THRESHOLD = 0.1
TOP_RATIO = 0.1
NUM_POWER_ITERS = 10
_LANE = 128


def _round_up(x, m):
    return (x + m - 1) // m * m


# ----------------------------------------------------------------------------
# Kernel 1: SM spectral matching (compatibility matrix + power iteration)
# ----------------------------------------------------------------------------
def _sm_kernel(coords_ln_ref, coords_sb_ref, eig_ref, *, n_valid):
    # coords_ln_ref: (8, Np) f32 lane-dense  (rows 0:3 src xyz, 3:6 ref xyz, 6:8 pad)
    # coords_sb_ref: (Np, 8) f32 sublane-major copy of the same coordinates
    # eig_ref      : (1, Np) f32 lane-dense output (leading eigenvector)
    n_pad = coords_ln_ref.shape[1]

    # Pairwise squared distances via direct coordinate differences (matches the
    # reference exactly; avoids Gram-trick cancellation for near-duplicate
    # keypoints).  Row broadcasts come from the lane-dense copy, column
    # broadcasts from the sublane-major copy -> no in-kernel transposes.
    d2_src = jnp.zeros((n_pad, n_pad), jnp.float32)
    d2_ref = jnp.zeros((n_pad, n_pad), jnp.float32)
    for k in range(3):
        ds = coords_sb_ref[:, k:k + 1] - coords_ln_ref[k:k + 1, :]      # (Np, Np)
        d2_src = d2_src + ds * ds
        dr = coords_sb_ref[:, k + 3:k + 4] - coords_ln_ref[k + 3:k + 4, :]
        d2_ref = d2_ref + dr * dr

    # TODO(synk): for n_valid >~ 2K the (Np, Np) compatibility matrix should be
    # tiled over columns (it no longer fits v7x/v5e scoped VMEM); not needed at
    # the correspondence counts used by GeoTransformer's coarse matching.
    m = jnp.sqrt(d2_src) - jnp.sqrt(d2_ref)
    sigma = INLIER_THRESHOLD / 3.0
    m = jnp.maximum(0.0, 4.5 - m * m / (2.0 * sigma * sigma))

    # zero diagonal + mask padded rows/cols
    row = lax.broadcasted_iota(jnp.int32, (n_pad, n_pad), 0)
    col = lax.broadcasted_iota(jnp.int32, (n_pad, n_pad), 1)
    keep = (row != col) & (row < n_valid) & (col < n_valid)
    m = jnp.where(keep, m, 0.0)

    # 10-step power iteration, fully unrolled (LLO scheduler sees the whole
    # dependent chain).  v kept as a lane-dense row (1, Np); M is symmetric so
    # v @ M == (M @ v)^T.  (For very small N a VPU+XLU matvec can beat the
    # 1-row MXU matmul on v5e; kept on the MXU here for simplicity.)
    v = jnp.ones((1, n_pad), jnp.float32)
    for it in range(NUM_POWER_ITERS):
        v = jnp.dot(v, m, preferred_element_type=jnp.float32)
        nrm = jnp.sqrt(jnp.sum(v * v, axis=-1, keepdims=True)) + 1e-6
        if it + 1 < NUM_POWER_ITERS:
            # intermediate normalizations only fix the scale, so the approx EUP
            # reciprocal is safe and keeps the divide off the VALU critical path
            v = v * pl.reciprocal(nrm, approx=True)
        else:
            v = v / nrm  # exact divide on the final step (output accuracy)
    eig_ref[...] = v


def sm_pallas(corr, inlier_threshold=INLIER_THRESHOLD, top_ratio=TOP_RATIO):
    """Pallas version of SM(). corr: (N, 6) f32 -> (pred_labels (1,N), eig (1,N))."""
    del inlier_threshold  # baked into the kernel (matches the default 0.1)
    n = corr.shape[0]
    n_pad = max(_round_up(n, _LANE), _LANE)
    corr32 = corr.astype(jnp.float32)

    # wrapper-side layout plumbing: sublane-major (Np, 8) and lane-dense (8, Np)
    coords_sb = jnp.zeros((n_pad, 8), jnp.float32).at[:n, :6].set(corr32)
    coords_ln = coords_sb.T

    kernel = functools.partial(_sm_kernel, n_valid=n)
    eig_pad = pl.pallas_call(
        kernel,
        out_shape=jax.ShapeDtypeStruct((1, n_pad), jnp.float32),
        grid=(1,),
        in_specs=[
            pl.BlockSpec((8, n_pad), lambda i: (0, 0)),
            pl.BlockSpec((n_pad, 8), lambda i: (0, 0)),
        ],
        out_specs=pl.BlockSpec((1, n_pad), lambda i: (0, 0)),
        compiler_params=pltpu.CompilerParams(
            dimension_semantics=("arbitrary",)),
    )(coords_ln, coords_sb)
    eig = eig_pad[:, :n]

    # top-k selection / label scatter = glue; int() truncation matches the
    # PyTorch reference `int(leading_eig.shape[1] * top_ratio)`.
    k = int(n * top_ratio)
    _, top_idx = lax.top_k(eig[0], k)
    pred_labels = jnp.zeros((1, n), jnp.float32).at[0, top_idx].set(1.0)
    return pred_labels, eig


# ----------------------------------------------------------------------------
# Kernel 2: per-correspondence patch matching scores
#   matching_scores = einsum('bnd,bmd->bnm', ref_feats, src_feats) / sqrt(D_f)
# ----------------------------------------------------------------------------
def _matching_scores_kernel(ref_ref, src_ref, out_ref, *, scale, group):
    # ref_ref/src_ref: (G, K, D) bf16 ; out_ref: (K, G*K) f32 lane-dense slab.
    parts = []
    for g in range(group):
        # contract the feature dim of both operands directly (no s.T relayout)
        parts.append(lax.dot_general(
            ref_ref[g], src_ref[g],
            dimension_numbers=(((1,), (1,)), ((), ())),
            preferred_element_type=jnp.float32))
    out_ref[...] = jnp.concatenate(parts, axis=-1) * scale


def matching_scores_pallas(ref_knn_feats, src_knn_feats, feats_f_dim, group=4):
    """ref/src_knn_feats: (B, K, D) -> matching_scores (B, K, K) f32."""
    b, k, d = ref_knn_feats.shape
    scale = 1.0 / float(feats_f_dim) ** 0.5

    # pick G so the packed output slab (K, G*K) is lane-dense (G*K % 128 == 0);
    # per-step footprint ~ 2*(2*G*K*D*2 + G*K*K*4) bytes, far under every
    # generation's scoped VMEM at these shapes.
    group = max(1, min(group, b))
    while (group * k) % _LANE != 0 and group < b:
        group += 1
    if (group * k) % _LANE != 0:
        group = b  # fallback: one slab, block == full dims still stores densely

    b_pad = _round_up(b, group)
    n_groups = b_pad // group

    # bf16 inputs halve HBM->VMEM DMA bytes; MXU accumulates in f32.
    ref_bf = jnp.zeros((b_pad, k, d), jnp.bfloat16).at[:b].set(
        ref_knn_feats.astype(jnp.bfloat16))
    src_bf = jnp.zeros((b_pad, k, d), jnp.bfloat16).at[:b].set(
        src_knn_feats.astype(jnp.bfloat16))

    kernel = functools.partial(_matching_scores_kernel, scale=scale, group=group)
    packed = pl.pallas_call(
        kernel,
        out_shape=jax.ShapeDtypeStruct((n_groups * k, group * k), jnp.float32),
        grid=(n_groups,),  # >= 2 parallel steps keeps both v7x TensorCores busy
        in_specs=[
            pl.BlockSpec((group, k, d), lambda i: (i, 0, 0)),
            pl.BlockSpec((group, k, d), lambda i: (i, 0, 0)),
        ],
        out_specs=pl.BlockSpec((k, group * k), lambda i: (i, 0)),
        compiler_params=pltpu.CompilerParams(
            dimension_semantics=("parallel",)),
    )(ref_bf, src_bf)

    # unpack the lane-packed slab back to (B, K, K): pure wrapper-side layout.
    scores = packed.reshape(n_groups, k, group, k)
    scores = jnp.transpose(scores, (0, 2, 1, 3)).reshape(b_pad, k, k)
    return scores[:b]


# ----------------------------------------------------------------------------
# Pure-JAX references (semantics copied from the PyTorch code) for verification
# ----------------------------------------------------------------------------
def _sm_ref(corr):
    diff = corr[:, None, :] - corr[None, :, :]
    m = (jnp.sum(diff[:, :, 0:3] ** 2, -1) ** 0.5
         - jnp.sum(diff[:, :, 3:6] ** 2, -1) ** 0.5)
    sigma = INLIER_THRESHOLD / 3.0
    m = jnp.maximum(0.0, 4.5 - m ** 2 / 2.0 / sigma ** 2)
    n = corr.shape[0]
    m = m * (1.0 - jnp.eye(n, dtype=m.dtype))
    v = jnp.ones((n, 1), jnp.float32)
    for _ in range(NUM_POWER_ITERS):
        v = m @ v
        v = v / (jnp.linalg.norm(v) + 1e-6)
    return v[:, 0]


def _scores_ref(ref_f, src_f, d_f):
    return jnp.einsum('bnd,bmd->bnm', ref_f, src_f) / d_f ** 0.5


# ----------------------------------------------------------------------------
if __name__ == "__main__":
    key = jax.random.PRNGKey(0)
    k1, k2, k3, k4 = jax.random.split(key, 4)

    # --- SM path: 128 "sup" keypoint correspondences (src xyz | ref xyz) ---
    n_corr = 128
    src_keypts = jax.random.normal(k1, (n_corr, 3), jnp.float32)
    ref_keypts = jax.random.normal(k2, (n_corr, 3), jnp.float32)
    corr = jnp.concatenate([src_keypts, ref_keypts], axis=-1)  # (N, 6)

    pred_labels, eig = sm_pallas(corr)
    eig = jax.block_until_ready(eig)
    eig_ref = _sm_ref(corr)
    assert jnp.allclose(eig[0], eig_ref, atol=1e-3, rtol=1e-3), "SM mismatch"
    assert int(pred_labels.sum()) == int(n_corr * TOP_RATIO)

    # --- matching-scores path: B correspondences, K knn points, D features ---
    b, kpp, d_feat = 8, 32, 64
    ref_knn_feats = jax.random.normal(k3, (b, kpp, d_feat), jnp.float32)
    src_knn_feats = jax.random.normal(k4, (b, kpp, d_feat), jnp.float32)

    scores = matching_scores_pallas(ref_knn_feats, src_knn_feats, d_feat)
    scores = jax.block_until_ready(scores)
    # compare against the reference on the same bf16-quantized inputs (bf16 DMA
    # is an intentional optimization; the kernel itself accumulates in f32).
    ref_q = ref_knn_feats.astype(jnp.bfloat16).astype(jnp.float32)
    src_q = src_knn_feats.astype(jnp.bfloat16).astype(jnp.float32)
    scores_ref = _scores_ref(ref_q, src_q, d_feat)
    assert jnp.allclose(scores, scores_ref, atol=1e-3, rtol=1e-3), "scores mismatch"

    print("KERNEL_OK")
</pallas_src>

<mosaic_0001>
module attributes {stable_mosaic.version = 11 : i64} {
  func.func @_sm_kernel(%arg0: i32, %arg1: memref<8x128xf32, #tpu.memory_space<vmem>>, %arg2: memref<128x8xf32, #tpu.memory_space<vmem>>, %arg3: memref<1x128xf32, #tpu.memory_space<vmem>>) attributes {dimension_semantics = [#tpu.dimension_semantics<arbitrary>], iteration_bounds = array<i64: 1>, scalar_prefetch = 0 : i64, scratch_operands = 0 : i64, tpu.core_type = #tpu.core_type<tc>, window_params = [{pipeline_mode = #tpu.pipeline_mode<synchronous>, transform_indices = @transform_0, window_bounds = array<i64: 8, 128>}, {pipeline_mode = #tpu.pipeline_mode<synchronous>, transform_indices = @transform_1, window_bounds = array<i64: 128, 8>}, {pipeline_mode = #tpu.pipeline_mode<synchronous>, transform_indices = @transform_2, window_bounds = array<i64: 1, 128>}]} {
    %cst = arith.constant 0.000000e+00 : f32
    %0 = vector.broadcast %cst : f32 to vector<128x128xf32>
    %cst_0 = arith.constant 0.000000e+00 : f32
    %1 = vector.broadcast %cst_0 : f32 to vector<128x128xf32>
    %c0 = arith.constant 0 : index
    %c0_1 = arith.constant 0 : index
    %2 = vector.load %arg2[%c0, %c0_1] : memref<128x8xf32, #tpu.memory_space<vmem>>, vector<128x1xf32>
    %c0_2 = arith.constant 0 : index
    %c0_3 = arith.constant 0 : index
    %3 = vector.load %arg1[%c0_2, %c0_3] : memref<8x128xf32, #tpu.memory_space<vmem>>, vector<1x128xf32>
    %4 = vector.broadcast %2 : vector<128x1xf32> to vector<128x128xf32>
    %5 = vector.broadcast %3 : vector<1x128xf32> to vector<128x128xf32>
    %6 = arith.subf %4, %5 : vector<128x128xf32>
    %7 = arith.mulf %6, %6 : vector<128x128xf32>
    %8 = arith.addf %0, %7 : vector<128x128xf32>
    %c0_4 = arith.constant 0 : index
    %c3 = arith.constant 3 : index
    %9 = vector.load %arg2[%c0_4, %c3] : memref<128x8xf32, #tpu.memory_space<vmem>>, vector<128x1xf32>
    %c3_5 = arith.constant 3 : index
    %c0_6 = arith.constant 0 : index
    %10 = vector.load %arg1[%c3_5, %c0_6] : memref<8x128xf32, #tpu.memory_space<vmem>>, vector<1x128xf32>
    %11 = vector.broadcast %9 : vector<128x1xf32> to vector<128x128xf32>
    %12 = vector.broadcast %10 : vector<1x128xf32> to vector<128x128xf32>
    %13 = arith.subf %11, %12 : vector<128x128xf32>
    %14 = arith.mulf %13, %13 : vector<128x128xf32>
    %15 = arith.addf %1, %14 : vector<128x128xf32>
    %c0_7 = arith.constant 0 : index
    %c1 = arith.constant 1 : index
    %16 = vector.load %arg2[%c0_7, %c1] : memref<128x8xf32, #tpu.memory_space<vmem>>, vector<128x1xf32>
    %c1_8 = arith.constant 1 : index
    %c0_9 = arith.constant 0 : index
    %17 = vector.load %arg1[%c1_8, %c0_9] : memref<8x128xf32, #tpu.memory_space<vmem>>, vector<1x128xf32>
    %18 = vector.broadcast %16 : vector<128x1xf32> to vector<128x128xf32>
    %19 = vector.broadcast %17 : vector<1x128xf32> to vector<128x128xf32>
    %20 = arith.subf %18, %19 : vector<128x128xf32>
    %21 = arith.mulf %20, %20 : vector<128x128xf32>
    %22 = arith.addf %8, %21 : vector<128x128xf32>
    %c0_10 = arith.constant 0 : index
    %c4 = arith.constant 4 : index
    %23 = vector.load %arg2[%c0_10, %c4] : memref<128x8xf32, #tpu.memory_space<vmem>>, vector<128x1xf32>
    %c4_11 = arith.constant 4 : index
    %c0_12 = arith.constant 0 : index
    %24 = vector.load %arg1[%c4_11, %c0_12] : memref<8x128xf32, #tpu.memory_space<vmem>>, vector<1x128xf32>
    %25 = vector.broadcast %23 : vector<128x1xf32> to vector<128x128xf32>
    %26 = vector.broadcast %24 : vector<1x128xf32> to vector<128x128xf32>
    %27 = arith.subf %25, %26 : vector<128x128xf32>
    %28 = arith.mulf %27, %27 : vector<128x128xf32>
    %29 = arith.addf %15, %28 : vector<128x128xf32>
    %c0_13 = arith.constant 0 : index
    %c2 = arith.constant 2 : index
    %30 = vector.load %arg2[%c0_13, %c2] : memref<128x8xf32, #tpu.memory_space<vmem>>, vector<128x1xf32>
    %c2_14 = arith.constant 2 : index
    %c0_15 = arith.constant 0 : index
    %31 = vector.load %arg1[%c2_14, %c0_15] : memref<8x128xf32, #tpu.memory_space<vmem>>, vector<1x128xf32>
    %32 = vector.broadcast %30 : vector<128x1xf32> to vector<128x128xf32>
    %33 = vector.broadcast %31 : vector<1x128xf32> to vector<128x128xf32>
    %34 = arith.subf %32, %33 : vector<128x128xf32>
    %35 = arith.mulf %34, %34 : vector<128x128xf32>
    %36 = arith.addf %22, %35 : vector<128x128xf32>
    %c0_16 = arith.constant 0 : index
    %c5 = arith.constant 5 : index
    %37 = vector.load %arg2[%c0_16, %c5] : memref<128x8xf32, #tpu.memory_space<vmem>>, vector<128x1xf32>
    %c5_17 = arith.constant 5 : index
    %c0_18 = arith.constant 0 : index
    %38 = vector.load %arg1[%c5_17, %c0_18] : memref<8x128xf32, #tpu.memory_space<vmem>>, vector<1x128xf32>
    %39 = vector.broadcast %37 : vector<128x1xf32> to vector<128x128xf32>
    %40 = vector.broadcast %38 : vector<1x128xf32> to vector<128x128xf32>
    %41 = arith.subf %39, %40 : vector<128x128xf32>
    %42 = arith.mulf %41, %41 : vector<128x128xf32>
    %43 = arith.addf %29, %42 : vector<128x128xf32>
    %44 = math.sqrt %36 : vector<128x128xf32>
    %45 = math.sqrt %43 : vector<128x128xf32>
    %46 = arith.subf %44, %45 : vector<128x128xf32>
    %47 = arith.mulf %46, %46 : vector<128x128xf32>
    %cst_19 = arith.constant 0.00222222228 : f32
    %48 = vector.broadcast %cst_19 : f32 to vector<128x128xf32>
    %49 = arith.divf %47, %48 : vector<128x128xf32>
    %cst_20 = arith.constant 4.500000e+00 : f32
    %50 = vector.broadcast %cst_20 : f32 to vector<128x128xf32>
    %51 = arith.subf %50, %49 : vector<128x128xf32>
    %cst_21 = arith.constant 0.000000e+00 : f32
    %52 = vector.broadcast %cst_21 : f32 to vector<128x128xf32>
    %53 = arith.maximumf %52, %51 : vector<128x128xf32>
    %54 = tpu.iota {dimensions = array<i32: 0>} : vector<128x128xi32>
    %55 = tpu.iota {dimensions = array<i32: 1>} : vector<128x128xi32>
    %56 = arith.cmpi ne, %54, %55 : vector<128x128xi32>
    %c128_i32 = arith.constant 128 : i32
    %57 = vector.broadcast %c128_i32 : i32 to vector<128x128xi32>
    %58 = arith.cmpi slt, %54, %57 : vector<128x128xi32>
    %59 = arith.andi %56, %58 : vector<128x128xi1>
    %c128_i32_22 = arith.constant 128 : i32
    %60 = vector.broadcast %c128_i32_22 : i32 to vector<128x128xi32>
    %61 = arith.cmpi slt, %55, %60 : vector<128x128xi32>
    %62 = arith.andi %59, %61 : vector<128x128xi1>
    %cst_23 = arith.constant 0.000000e+00 : f32
    %63 = vector.broadcast %cst_23 : f32 to vector<128x128xf32>
    %64 = arith.select %62, %53, %63 : vector<128x128xi1>, vector<128x128xf32>
    %cst_24 = arith.constant 1.000000e+00 : f32
    %65 = vector.broadcast %cst_24 : f32 to vector<1x128xf32>
    %cst_25 = arith.constant dense<0.000000e+00> : vector<1x128xf32>
    %66 = tpu.matmul %65, %64, %cst_25 {dimension_numbers = #tpu.dot_dimension_numbers<[1], [0], [0], [1], [0, 0, 1, 1], [], []>} : vector<1x128xf32>, vector<128x128xf32>, vector<1x128xf32> -> vector<1x128xf32>
    %67 = arith.mulf %66, %66 : vector<1x128xf32>
    %cst_26 = arith.constant dense<0.000000e+00> : vector<1xf32>
    %68 = vector.multi_reduction <add>, %67, %cst_26 [1] : vector<1x128xf32> to vector<1xf32>
    %69 = vector.shape_cast %68 : vector<1xf32> to vector<1x1xf32>
    %70 = math.sqrt %69 : vector<1x1xf32>
    %cst_27 = arith.constant 9.99999997E-7 : f32
    %71 = vector.broadcast %cst_27 : f32 to vector<1x1xf32>
    %72 = arith.addf %70, %71 : vector<1x1xf32>
    %73 = tpu.reciprocal %72 {approx = true} : vector<1x1xf32> -> vector<1x1xf32>
    %74 = vector.broadcast %73 : vector<1x1xf32> to vector<1x128xf32>
    %75 = arith.mulf %66, %74 : vector<1x128xf32>
    %cst_28 = arith.constant dense<0.000000e+00> : vector<1x128xf32>
    %76 = tpu.matmul %75, %64, %cst_28 {dimension_numbers = #tpu.dot_dimension_numbers<[1], [0], [0], [1], [0, 0, 1, 1], [], []>} : vector<1x128xf32>, vector<128x128xf32>, vector<1x128xf32> -> vector<1x128xf32>
    %77 = arith.mulf %76, %76 : vector<1x128xf32>
    %cst_29 = arith.constant dense<0.000000e+00> : vector<1xf32>
    %78 = vector.multi_reduction <add>, %77, %cst_29 [1] : vector<1x128xf32> to vector<1xf32>
    %79 = vector.shape_cast %78 : vector<1xf32> to vector<1x1xf32>
    %80 = math.sqrt %79 : vector<1x1xf32>
    %cst_30 = arith.constant 9.99999997E-7 : f32
    %81 = vector.broadcast %cst_30 : f32 to vector<1x1xf32>
    %82 = arith.addf %80, %81 : vector<1x1xf32>
    %83 = tpu.reciprocal %82 {approx = true} : vector<1x1xf32> -> vector<1x1xf32>
    %84 = vector.broadcast %83 : vector<1x1xf32> to vector<1x128xf32>
    %85 = arith.mulf %76, %84 : vector<1x128xf32>
    %cst_31 = arith.constant dense<0.000000e+00> : vector<1x128xf32>
    %86 = tpu.matmul %85, %64, %cst_31 {dimension_numbers = #tpu.dot_dimension_numbers<[1], [0], [0], [1], [0, 0, 1, 1], [], []>} : vector<1x128xf32>, vector<128x128xf32>, vector<1x128xf32> -> vector<1x128xf32>
    %87 = arith.mulf %86, %86 : vector<1x128xf32>
    %cst_32 = arith.constant dense<0.000000e+00> : vector<1xf32>
    %88 = vector.multi_reduction <add>, %87, %cst_32 [1] : vector<1x128xf32> to vector<1xf32>
    %89 = vector.shape_cast %88 : vector<1xf32> to vector<1x1xf32>
    %90 = math.sqrt %89 : vector<1x1xf32>
    %cst_33 = arith.constant 9.99999997E-7 : f32
    %91 = vector.broadcast %cst_33 : f32 to vector<1x1xf32>
    %92 = arith.addf %90, %91 : vector<1x1xf32>
    %93 = tpu.reciprocal %92 {approx = true} : vector<1x1xf32> -> vector<1x1xf32>
    %94 = vector.broadcast %93 : vector<1x1xf32> to vector<1x128xf32>
    %95 = arith.mulf %86, %94 : vector<1x128xf32>
    %cst_34 = arith.constant dense<0.000000e+00> : vector<1x128xf32>
    %96 = tpu.matmul %95, %64, %cst_34 {dimension_numbers = #tpu.dot_dimension_numbers<[1], [0], [0], [1], [0, 0, 1, 1], [], []>} : vector<1x128xf32>, vector<128x128xf32>, vector<1x128xf32> -> vector<1x128xf32>
    %97 = arith.mulf %96, %96 : vector<1x128xf32>
    %cst_35 = arith.constant dense<0.000000e+00> : vector<1xf32>
    %98 = vector.multi_reduction <add>, %97, %cst_35 [1] : vector<1x128xf32> to vector<1xf32>
    %99 = vector.shape_cast %98 : vector<1xf32> to vector<1x1xf32>
    %100 = math.sqrt %99 : vector<1x1xf32>
    %cst_36 = arith.constant 9.99999997E-7 : f32
    %101 = vector.broadcast %cst_36 : f32 to vector<1x1xf32>
    %102 = arith.addf %100, %101 : vector<1x1xf32>
    %103 = tpu.reciprocal %102 {approx = true} : vector<1x1xf32> -> vector<1x1xf32>
    %104 = vector.broadcast %103 : vector<1x1xf32> to vector<1x128xf32>
    %105 = arith.mulf %96, %104 : vector<1x128xf32>
    %cst_37 = arith.constant dense<0.000000e+00> : vector<1x128xf32>
    %106 = tpu.matmul %105, %64, %cst_37 {dimension_numbers = #tpu.dot_dimension_numbers<[1], [0], [0], [1], [0, 0, 1, 1], [], []>} : vector<1x128xf32>, vector<128x128xf32>, vector<1x128xf32> -> vector<1x128xf32>
    %107 = arith.mulf %106, %106 : vector<1x128xf32>
    %cst_38 = arith.constant dense<0.000000e+00> : vector<1xf32>
    %108 = vector.multi_reduction <add>, %107, %cst_38 [1] : vector<1x128xf32> to vector<1xf32>
    %109 = vector.shape_cast %108 : vector<1xf32> to vector<1x1xf32>
    %110 = math.sqrt %109 : vector<1x1xf32>
    %cst_39 = arith.constant 9.99999997E-7 : f32
    %111 = vector.broadcast %cst_39 : f32 to vector<1x1xf32>
    %112 = arith.addf %110, %111 : vector<1x1xf32>
    %113 = tpu.reciprocal %112 {approx = true} : vector<1x1xf32> -> vector<1x1xf32>
    %114 = vector.broadcast %113 : vector<1x1xf32> to vector<1x128xf32>
    %115 = arith.mulf %106, %114 : vector<1x128xf32>
    %cst_40 = arith.constant dense<0.000000e+00> : vector<1x128xf32>
    %116 = tpu.matmul %115, %64, %cst_40 {dimension_numbers = #tpu.dot_dimension_numbers<[1], [0], [0], [1], [0, 0, 1, 1], [], []>} : vector<1x128xf32>, vector<128x128xf32>, vector<1x128xf32> -> vector<1x128xf32>
    %117 = arith.mulf %116, %116 : vector<1x128xf32>
    %cst_41 = arith.constant dense<0.000000e+00> : vector<1xf32>
    %118 = vector.multi_reduction <add>, %117, %cst_41 [1] : vector<1x128xf32> to vector<1xf32>
    %119 = vector.shape_cast %118 : vector<1xf32> to vector<1x1xf32>
    %120 = math.sqrt %119 : vector<1x1xf32>
    %cst_42 = arith.constant 9.99999997E-7 : f32
    %121 = vector.broadcast %cst_42 : f32 to vector<1x1xf32>
    %122 = arith.addf %120, %121 : vector<1x1xf32>
    %123 = tpu.reciprocal %122 {approx = true} : vector<1x1xf32> -> vector<1x1xf32>
    %124 = vector.broadcast %123 : vector<1x1xf32> to vector<1x128xf32>
    %125 = arith.mulf %116, %124 : vector<1x128xf32>
    %cst_43 = arith.constant dense<0.000000e+00> : vector<1x128xf32>
    %126 = tpu.matmul %125, %64, %cst_43 {dimension_numbers = #tpu.dot_dimension_numbers<[1], [0], [0], [1], [0, 0, 1, 1], [], []>} : vector<1x128xf32>, vector<128x128xf32>, vector<1x128xf32> -> vector<1x128xf32>
    %127 = arith.mulf %126, %126 : vector<1x128xf32>
    %cst_44 = arith.constant dense<0.000000e+00> : vector<1xf32>
    %128 = vector.multi_reduction <add>, %127, %cst_44 [1] : vector<1x128xf32> to vector<1xf32>
    %129 = vector.shape_cast %128 : vector<1xf32> to vector<1x1xf32>
    %130 = math.sqrt %129 : vector<1x1xf32>
    %cst_45 = arith.constant 9.99999997E-7 : f32
    %131 = vector.broadcast %cst_45 : f32 to vector<1x1xf32>
    %132 = arith.addf %130, %131 : vector<1x1xf32>
    %133 = tpu.reciprocal %132 {approx = true} : vector<1x1xf32> -> vector<1x1xf32>
    %134 = vector.broadcast %133 : vector<1x1xf32> to vector<1x128xf32>
    %135 = arith.mulf %126, %134 : vector<1x128xf32>
    %cst_46 = arith.constant dense<0.000000e+00> : vector<1x128xf32>
    %136 = tpu.matmul %135, %64, %cst_46 {dimension_numbers = #tpu.dot_dimension_numbers<[1], [0], [0], [1], [0, 0, 1, 1], [], []>} : vector<1x128xf32>, vector<128x128xf32>, vector<1x128xf32> -> vector<1x128xf32>
    %137 = arith.mulf %136, %136 : vector<1x128xf32>
    %cst_47 = arith.constant dense<0.000000e+00> : vector<1xf32>
    %138 = vector.multi_reduction <add>, %137, %cst_47 [1] : vector<1x128xf32> to vector<1xf32>
    %139 = vector.shape_cast %138 : vector<1xf32> to vector<1x1xf32>
    %140 = math.sqrt %139 : vector<1x1xf32>
    %cst_48 = arith.constant 9.99999997E-7 : f32
    %141 = vector.broadcast %cst_48 : f32 to vector<1x1xf32>
    %142 = arith.addf %140, %141 : vector<1x1xf32>
    %143 = tpu.reciprocal %142 {approx = true} : vector<1x1xf32> -> vector<1x1xf32>
    %144 = vector.broadcast %143 : vector<1x1xf32> to vector<1x128xf32>
    %145 = arith.mulf %136, %144 : vector<1x128xf32>
    %cst_49 = arith.constant dense<0.000000e+00> : vector<1x128xf32>
    %146 = tpu.matmul %145, %64, %cst_49 {dimension_numbers = #tpu.dot_dimension_numbers<[1], [0], [0], [1], [0, 0, 1, 1], [], []>} : vector<1x128xf32>, vector<128x128xf32>, vector<1x128xf32> -> vector<1x128xf32>
    %147 = arith.mulf %146, %146 : vector<1x128xf32>
    %cst_50 = arith.constant dense<0.000000e+00> : vector<1xf32>
    %148 = vector.multi_reduction <add>, %147, %cst_50 [1] : vector<1x128xf32> to vector<1xf32>
    %149 = vector.shape_cast %148 : vector<1xf32> to vector<1x1xf32>
    %150 = math.sqrt %149 : vector<1x1xf32>
    %cst_51 = arith.constant 9.99999997E-7 : f32
    %151 = vector.broadcast %cst_51 : f32 to vector<1x1xf32>
    %152 = arith.addf %150, %151 : vector<1x1xf32>
    %153 = tpu.reciprocal %152 {approx = true} : vector<1x1xf32> -> vector<1x1xf32>
    %154 = vector.broadcast %153 : vector<1x1xf32> to vector<1x128xf32>
    %155 = arith.mulf %146, %154 : vector<1x128xf32>
    %cst_52 = arith.constant dense<0.000000e+00> : vector<1x128xf32>
    %156 = tpu.matmul %155, %64, %cst_52 {dimension_numbers = #tpu.dot_dimension_numbers<[1], [0], [0], [1], [0, 0, 1, 1], [], []>} : vector<1x128xf32>, vector<128x128xf32>, vector<1x128xf32> -> vector<1x128xf32>
    %157 = arith.mulf %156, %156 : vector<1x128xf32>
    %cst_53 = arith.constant dense<0.000000e+00> : vector<1xf32>
    %158 = vector.multi_reduction <add>, %157, %cst_53 [1] : vector<1x128xf32> to vector<1xf32>
    %159 = vector.shape_cast %158 : vector<1xf32> to vector<1x1xf32>
    %160 = math.sqrt %159 : vector<1x1xf32>
    %cst_54 = arith.constant 9.99999997E-7 : f32
    %161 = vector.broadcast %cst_54 : f32 to vector<1x1xf32>
    %162 = arith.addf %160, %161 : vector<1x1xf32>
    %163 = vector.broadcast %162 : vector<1x1xf32> to vector<1x128xf32>
    %164 = arith.divf %156, %163 : vector<1x128xf32>
    %c0_55 = arith.constant 0 : index
    %c0_56 = arith.constant 0 : index
    %165 = vector.load %arg3[%c0_55, %c0_56] : memref<1x128xf32, #tpu.memory_space<vmem>>, vector<1x128xf32>
    tpu.vector_store %arg3[%c0_55, %c0_56], %164 {strides = array<i32>} : memref<1x128xf32, #tpu.memory_space<vmem>>, vector<1x128xf32>,
    return
  }
  func.func @transform_0(%arg0: i32) -> (i32, i32) {
    %c0_i32 = arith.constant 0 : i32
    %c0_i32_0 = arith.constant 0 : i32
    %c0_i32_1 = arith.constant 0 : i32
    return %c0_i32, %c0_i32_0 : i32, i32
  }
  func.func @transform_1(%arg0: i32) -> (i32, i32) {
    %c0_i32 = arith.constant 0 : i32
    %c0_i32_0 = arith.constant 0 : i32
    %c0_i32_1 = arith.constant 0 : i32
    return %c0_i32, %c0_i32_0 : i32, i32
  }
  func.func @transform_2(%arg0: i32) -> (i32, i32) {
    %c0_i32 = arith.constant 0 : i32
    %c0_i32_0 = arith.constant 0 : i32
    %c0_i32_1 = arith.constant 0 : i32
    return %c0_i32, %c0_i32_0 : i32, i32
  }
}

</mosaic_0001>

<llo_original>
// kernel: tpu_custom_call.1
$region0: #{tpu_custom_call.1}
  #allocation0 [shape = 'u32[]', space=smem, size = 0x4, offset = 0x4, fixed_abs, tag = 'smem constant byte address 0x4 - core index']
  #allocation1 [shape = 'u32[72,128]{1,0:T(1,128)}', space=vmem, size = 0x9000, scoped, tag = 'internal scratch']
  %s0 = inlined_call_operand.vmem [shape: f32[8,128], index: 0, kind: input, shape index: {}]
  %s1 = inlined_call_operand.vmem [shape: f32[128,8], index: 1, kind: input, shape index: {}]
  %s2 = inlined_call_operand.hbm [shape: f32[1,128], index: 2, kind: output, shape index: {}]
  %s3 = sld [smem:[#allocation0]]
  $region18: #{tpu_custom_call.1} parent=0
    _
  %s5 = ssub.s32 1, %s3
  %s6 = scalar_select 0, %s5, %s3
  $region1: #{tpu_custom_call.1} parent=0
    #allocation2 [shape = 'u8[512]{0}', space=vmem, size = 0x400, scoped, tag = 'output window, operand 0, single buffered']
    #allocation3 [shape = 's32[1]{0}', space=sflag, size = 0x4, scoped, tag = 'scoped memory for tpu_custom_call.1']
    %7 = vsyncpa [#allocation3], 0
    // Predicated region
    $region2: #{tpu_custom_call.1} parent=1 // pred_check
      _
    $region3: #{tpu_custom_call.1} parent=1 // pred_check_branch
      %9 = sbr.rel (0) target = $region5
    $region4: #{tpu_custom_call.1} parent=1 // pred_region
      _
    $region5: #{tpu_custom_call.1} parent=1 // pred_fallthru
      _
    // Predicated region
    $region6: #{tpu_custom_call.1} parent=1 // pred_check
      _
    $region7: #{tpu_custom_call.1} parent=1 // pred_check_branch
      %11 = sbr.rel (0) target = $region9
    $region8: #{tpu_custom_call.1} parent=1 // pred_region
      _
    $region9: #{tpu_custom_call.1} parent=1 // pred_fallthru
      _
    %v12 = vld [vmem:[%s1] sm:$0xff]
    %v13 = vld [vmem:[%s1 + $0x8] sm:$0xff]
    %v14 = vld [vmem:[%s1 + $0x10] sm:$0xff]
    %v15 = vld [vmem:[%s1 + $0x18] sm:$0xff]
    %v16 = vld [vmem:[%s1 + $0x20] sm:$0xff]
    %v17 = vld [vmem:[%s1 + $0x28] sm:$0xff]
    %v18 = vld [vmem:[%s1 + $0x30] sm:$0xff]
    %v19 = vld [vmem:[%s1 + $0x38] sm:$0xff]
    %v20 = vld [vmem:[%s1 + $0x40] sm:$0xff]
    %v21 = vld [vmem:[%s1 + $0x48] sm:$0xff]
    %v22 = vld [vmem:[%s1 + $0x50] sm:$0xff]
    %v23 = vld [vmem:[%s1 + $0x58] sm:$0xff]
    %v24 = vld [vmem:[%s1 + $0x60] sm:$0xff]
    %v25 = vld [vmem:[%s1 + $0x68] sm:$0xff]
    %v26 = vld [vmem:[%s1 + $0x70] sm:$0xff]
    %v27 = vld [vmem:[%s1 + $0x78] sm:$0xff]
    %v28 = vld [vmem:[%s0] sm:$0x1]
    %30 = vset.pattern.permute.xlu0 0
    %31 = vperm.xlu0 %30, %v12
    %v32 = vpop.permute.xlu0 %31
    %35 = vset.pattern.permute.xlu0 0
    %36 = vperm.xlu0 %35, %v13
    %v37 = vpop.permute.xlu0 %36
    %40 = vset.pattern.permute.xlu0 0
    %41 = vperm.xlu0 %40, %v14
    %v42 = vpop.permute.xlu0 %41
    %45 = vset.pattern.permute.xlu0 0
    %46 = vperm.xlu0 %45, %v15
    %v47 = vpop.permute.xlu0 %46
    %50 = vset.pattern.permute.xlu0 0
    %51 = vperm.xlu0 %50, %v16
    %v52 = vpop.permute.xlu0 %51
    %55 = vset.pattern.permute.xlu0 0
    %56 = vperm.xlu0 %55, %v17
    %v57 = vpop.permute.xlu0 %56
    %60 = vset.pattern.permute.xlu0 0
    %61 = vperm.xlu0 %60, %v18
    %v62 = vpop.permute.xlu0 %61
    %65 = vset.pattern.permute.xlu0 0
    %66 = vperm.xlu0 %65, %v19
    %v67 = vpop.permute.xlu0 %66
    %70 = vset.pattern.permute.xlu0 0
    %71 = vperm.xlu0 %70, %v20
    %v72 = vpop.permute.xlu0 %71
    %75 = vset.pattern.permute.xlu0 0
    %76 = vperm.xlu0 %75, %v21
    %v77 = vpop.permute.xlu0 %76
    %80 = vset.pattern.permute.xlu0 0
    %81 = vperm.xlu0 %80, %v22
    %v82 = vpop.permute.xlu0 %81
    %85 = vset.pattern.permute.xlu0 0
    %86 = vperm.xlu0 %85, %v23
    %v87 = vpop.permute.xlu0 %86
    %90 = vset.pattern.permute.xlu0 0
    %91 = vperm.xlu0 %90, %v24
    %v92 = vpop.permute.xlu0 %91
    %95 = vset.pattern.permute.xlu0 0
    %96 = vperm.xlu0 %95, %v25
    %v97 = vpop.permute.xlu0 %96
    %100 = vset.pattern.permute.xlu0 0
    %101 = vperm.xlu0 %100, %v26
    %v102 = vpop.permute.xlu0 %101
    %105 = vset.pattern.permute.xlu0 0
    %106 = vperm.xlu0 %105, %v27
    %v107 = vpop.permute.xlu0 %106
    %v109 = vperm.slane %v28, 0
    %v110 = vsub.f32 %v32, %v109
    %v111 = vsub.f32 %v37, %v109
    %v112 = vsub.f32 %v42, %v109
    %v113 = vsub.f32 %v47, %v109
    %v114 = vsub.f32 %v52, %v109
    %v115 = vsub.f32 %v57, %v109
    %v116 = vsub.f32 %v62, %v109
    %v117 = vsub.f32 %v67, %v109
    %v118 = vsub.f32 %v72, %v109
    %v119 = vsub.f32 %v77, %v109
    %v120 = vsub.f32 %v82, %v109
    %v121 = vsub.f32 %v87, %v109
    %v122 = vsub.f32 %v92, %v109
    %v123 = vsub.f32 %v97, %v109
    %v124 = vsub.f32 %v102, %v109
    %v125 = vsub.f32 %v107, %v109
    %v126 = vmul.f32 %v110, %v110
    %v127 = vmul.f32 %v111, %v111
    %v128 = vmul.f32 %v112, %v112
    %v129 = vmul.f32 %v113, %v113
    %v130 = vmul.f32 %v114, %v114
    %v131 = vmul.f32 %v115, %v115
    %v132 = vmul.f32 %v116, %v116
    %v133 = vmul.f32 %v117, %v117
    %v134 = vmul.f32 %v118, %v118
    %v135 = vmul.f32 %v119, %v119
    %v136 = vmul.f32 %v120, %v120
    %v137 = vmul.f32 %v121, %v121
    %v138 = vmul.f32 %v122, %v122
    %v139 = vmul.f32 %v123, %v123
    %v140 = vmul.f32 %v124, %v124
    %v141 = vmul.f32 %v125, %v125
    %v142 = vadd.f32 %v126, 0.0
    %v143 = vadd.f32 %v127, 0.0
    %v144 = vadd.f32 %v128, 0.0
    %v145 = vadd.f32 %v129, 0.0
    %v146 = vadd.f32 %v130, 0.0
    %v147 = vadd.f32 %v131, 0.0
    %v148 = vadd.f32 %v132, 0.0
    %v149 = vadd.f32 %v133, 0.0
    %v150 = vadd.f32 %v134, 0.0
    %v151 = vadd.f32 %v135, 0.0
    %v152 = vadd.f32 %v136, 0.0
    %v153 = vadd.f32 %v137, 0.0
    %v154 = vadd.f32 %v138, 0.0
    %v155 = vadd.f32 %v139, 0.0
    %v156 = vadd.f32 %v140, 0.0
    %v157 = vadd.f32 %v141, 0.0
    %v158 = vld [vmem:[%s0 + $0x3] sm:$0x1]
    %159 = vset.pattern.permute.xlu0 3
    %160 = vperm.xlu0 %159, %v12
    %v161 = vpop.permute.xlu0 %160
    %163 = vset.pattern.permute.xlu0 3
    %164 = vperm.xlu0 %163, %v13
    %v165 = vpop.permute.xlu0 %164
    %167 = vset.pattern.permute.xlu0 3
    %168 = vperm.xlu0 %167, %v14
    %v169 = vpop.permute.xlu0 %168
    %171 = vset.pattern.permute.xlu0 3
    %172 = vperm.xlu0 %171, %v15
    %v173 = vpop.permute.xlu0 %172
    %175 = vset.pattern.permute.xlu0 3
    %176 = vperm.xlu0 %175, %v16
    %v177 = vpop.permute.xlu0 %176
    %179 = vset.pattern.permute.xlu0 3
    %180 = vperm.xlu0 %179, %v17
    %v181 = vpop.permute.xlu0 %180
    %183 = vset.pattern.permute.xlu0 3
    %184 = vperm.xlu0 %183, %v18
    %v185 = vpop.permute.xlu0 %184
    %187 = vset.pattern.permute.xlu0 3
    %188 = vperm.xlu0 %187, %v19
    %v189 = vpop.permute.xlu0 %188
    %191 = vset.pattern.permute.xlu0 3
    %192 = vperm.xlu0 %191, %v20
    %v193 = vpop.permute.xlu0 %192
    %195 = vset.pattern.permute.xlu0 3
    %196 = vperm.xlu0 %195, %v21
    %v197 = vpop.permute.xlu0 %196
    %199 = vset.pattern.permute.xlu0 3
    %200 = vperm.xlu0 %199, %v22
    %v201 = vpop.permute.xlu0 %200
    %203 = vset.pattern.permute.xlu0 3
    %204 = vperm.xlu0 %203, %v23
    %v205 = vpop.permute.xlu0 %204
    %207 = vset.pattern.permute.xlu0 3
    %208 = vperm.xlu0 %207, %v24
    %v209 = vpop.permute.xlu0 %208
    %211 = vset.pattern.permute.xlu0 3
    %212 = vperm.xlu0 %211, %v25
    %v213 = vpop.permute.xlu0 %212
    %215 = vset.pattern.permute.xlu0 3
    %216 = vperm.xlu0 %215, %v26
    %v217 = vpop.permute.xlu0 %216
    %219 = vset.pattern.permute.xlu0 3
    %220 = vperm.xlu0 %219, %v27
    %v221 = vpop.permute.xlu0 %220
    %v223 = vperm.slane %v158, 0
    %v224 = vsub.f32 %v161, %v223
    %v225 = vsub.f32 %v165, %v223
    %v226 = vsub.f32 %v169, %v223
    %v227 = vsub.f32 %v173, %v223
    %v228 = vsub.f32 %v177, %v223
    %v229 = vsub.f32 %v181, %v223
    %v230 = vsub.f32 %v185, %v223
    %v231 = vsub.f32 %v189, %v223
    %v232 = vsub.f32 %v193, %v223
    %v233 = vsub.f32 %v197, %v223
    %v234 = vsub.f32 %v201, %v223
    %v235 = vsub.f32 %v205, %v223
    %v236 = vsub.f32 %v209, %v223
    %v237 = vsub.f32 %v213, %v223
    %v238 = vsub.f32 %v217, %v223
    %v239 = vsub.f32 %v221, %v223
    %v240 = vmul.f32 %v224, %v224
    %v241 = vmul.f32 %v225, %v225
    %v242 = vmul.f32 %v226, %v226
    %v243 = vmul.f32 %v227, %v227
    %v244 = vmul.f32 %v228, %v228
    %v245 = vmul.f32 %v229, %v229
    %v246 = vmul.f32 %v230, %v230
    %v247 = vmul.f32 %v231, %v231
    %v248 = vmul.f32 %v232, %v232
    %v249 = vmul.f32 %v233, %v233
    %v250 = vmul.f32 %v234, %v234
    %v251 = vmul.f32 %v235, %v235
    %v252 = vmul.f32 %v236, %v236
    %v253 = vmul.f32 %v237, %v237
    %v254 = vmul.f32 %v238, %v238
    %v255 = vmul.f32 %v239, %v239
    %v256 = vadd.f32 %v240, 0.0
    %v257 = vadd.f32 %v241, 0.0
    %v258 = vadd.f32 %v242, 0.0
    %v259 = vadd.f32 %v243, 0.0
    %v260 = vadd.f32 %v244, 0.0
    %v261 = vadd.f32 %v245, 0.0
    %v262 = vadd.f32 %v246, 0.0
    %v263 = vadd.f32 %v247, 0.0
    %v264 = vadd.f32 %v248, 0.0
    %v265 = vadd.f32 %v249, 0.0
    %v266 = vadd.f32 %v250, 0.0
    %v267 = vadd.f32 %v251, 0.0
    %v268 = vadd.f32 %v252, 0.0
    %v269 = vadd.f32 %v253, 0.0
    %v270 = vadd.f32 %v254, 0.0
    %v271 = vadd.f32 %v255, 0.0
    %v272 = vld [vmem:[%s0 + $0x1] sm:$0x1]
    %273 = vset.pattern.permute.xlu0 1
    %274 = vperm.xlu0 %273, %v12
    %v275 = vpop.permute.xlu0 %274
    %277 = vset.pattern.permute.xlu0 1
    %278 = vperm.xlu0 %277, %v13
    %v279 = vpop.permute.xlu0 %278
    %281 = vset.pattern.permute.xlu0 1
    %282 = vperm.xlu0 %281, %v14
    %v283 = vpop.permute.xlu0 %282
    %285 = vset.pattern.permute.xlu0 1
    %286 = vperm.xlu0 %285, %v15
    %v287 = vpop.permute.xlu0 %286
    %289 = vset.pattern.permute.xlu0 1
    %290 = vperm.xlu0 %289, %v16
    %v291 = vpop.permute.xlu0 %290
    %293 = vset.pattern.permute.xlu0 1
    %294 = vperm.xlu0 %293, %v17
    %v295 = vpop.permute.xlu0 %294
    %297 = vset.pattern.permute.xlu0 1
    %298 = vperm.xlu0 %297, %v18
    %v299 = vpop.permute.xlu0 %298
    %301 = vset.pattern.permute.xlu0 1
    %302 = vperm.xlu0 %301, %v19
    %v303 = vpop.permute.xlu0 %302
    %305 = vset.pattern.permute.xlu0 1
    %306 = vperm.xlu0 %305, %v20
    %v307 = vpop.permute.xlu0 %306
    %309 = vset.pattern.permute.xlu0 1
    %310 = vperm.xlu0 %309, %v21
    %v311 = vpop.permute.xlu0 %310
    %313 = vset.pattern.permute.xlu0 1
    %314 = vperm.xlu0 %313, %v22
    %v315 = vpop.permute.xlu0 %314
    %317 = vset.pattern.permute.xlu0 1
    %318 = vperm.xlu0 %317, %v23
    %v319 = vpop.permute.xlu0 %318
    %321 = vset.pattern.permute.xlu0 1
    %322 = vperm.xlu0 %321, %v24
    %v323 = vpop.permute.xlu0 %322
    %325 = vset.pattern.permute.xlu0 1
    %326 = vperm.xlu0 %325, %v25
    %v327 = vpop.permute.xlu0 %326
    %329 = vset.pattern.permute.xlu0 1
    %330 = vperm.xlu0 %329, %v26
    %v331 = vpop.permute.xlu0 %330
    %333 = vset.pattern.permute.xlu0 1
    %334 = vperm.xlu0 %333, %v27
    %v335 = vpop.permute.xlu0 %334
    %v337 = vperm.slane %v272, 0
    %v338 = vsub.f32 %v275, %v337
    %v339 = vsub.f32 %v279, %v337
    %v340 = vsub.f32 %v283, %v337
    %v341 = vsub.f32 %v287, %v337
    %v342 = vsub.f32 %v291, %v337
    %v343 = vsub.f32 %v295, %v337
    %v344 = vsub.f32 %v299, %v337
    %v345 = vsub.f32 %v303, %v337
    %v346 = vsub.f32 %v307, %v337
    %v347 = vsub.f32 %v311, %v337
    %v348 = vsub.f32 %v315, %v337
    %v349 = vsub.f32 %v319, %v337
    %v350 = vsub.f32 %v323, %v337
    %v351 = vsub.f32 %v327, %v337
    %v352 = vsub.f32 %v331, %v337
    %v353 = vsub.f32 %v335, %v337
    %v354 = vmul.f32 %v338, %v338
    %v355 = vmul.f32 %v339, %v339
    %v356 = vmul.f32 %v340, %v340
    %v357 = vmul.f32 %v341, %v341
    %v358 = vmul.f32 %v342, %v342
    %v359 = vmul.f32 %v343, %v343
    %v360 = vmul.f32 %v344, %v344
    %v361 = vmul.f32 %v345, %v345
    %v362 = vmul.f32 %v346, %v346
    %v363 = vmul.f32 %v347, %v347
    %v364 = vmul.f32 %v348, %v348
    %v365 = vmul.f32 %v349, %v349
    %v366 = vmul.f32 %v350, %v350
    %v367 = vmul.f32 %v351, %v351
    %v368 = vmul.f32 %v352, %v352
    %v369 = vmul.f32 %v353, %v353
    %v370 = vadd.f32 %v142, %v354
    %v371 = vadd.f32 %v143, %v355
    %v372 = vadd.f32 %v144, %v356
    %v373 = vadd.f32 %v145, %v357
    %v374 = vadd.f32 %v146, %v358
    %v375 = vadd.f32 %v147, %v359
    %v376 = vadd.f32 %v148, %v360
    %v377 = vadd.f32 %v149, %v361
    %v378 = vadd.f32 %v150, %v362
    %v379 = vadd.f32 %v151, %v363
    %v380 = vadd.f32 %v152, %v364
    %v381 = vadd.f32 %v153, %v365
    %v382 = vadd.f32 %v154, %v366
    %v383 = vadd.f32 %v155, %v367
    %v384 = vadd.f32 %v156, %v368
    %v385 = vadd.f32 %v157, %v369
    %v386 = vld [vmem:[%s0 + $0x4] sm:$0x1]
    %387 = vset.pattern.permute.xlu0 4
    %388 = vperm.xlu0 %387, %v12
    %v389 = vpop.permute.xlu0 %388
    %391 = vset.pattern.permute.xlu0 4
    %392 = vperm.xlu0 %391, %v13
    %v393 = vpop.permute.xlu0 %392
    %395 = vset.pattern.permute.xlu0 4
    %396 = vperm.xlu0 %395, %v14
    %v397 = vpop.permute.xlu0 %396
    %399 = vset.pattern.permute.xlu0 4
    %400 = vperm.xlu0 %399, %v15
    %v401 = vpop.permute.xlu0 %400
    %403 = vset.pattern.permute.xlu0 4
    %404 = vperm.xlu0 %403, %v16
    %v405 = vpop.permute.xlu0 %404
    %407 = vset.pattern.permute.xlu0 4
    %408 = vperm.xlu0 %407, %v17
    %v409 = vpop.permute.xlu0 %408
    %411 = vset.pattern.permute.xlu0 4
    %412 = vperm.xlu0 %411, %v18
    %v413 = vpop.permute.xlu0 %412
    %415 = vset.pattern.permute.xlu0 4
    %416 = vperm.xlu0 %415, %v19
    %v417 = vpop.permute.xlu0 %416
    %419 = vset.pattern.permute.xlu0 4
    %420 = vperm.xlu0 %419, %v20
    %v421 = vpop.permute.xlu0 %420
    %423 = vset.pattern.permute.xlu0 4
    %424 = vperm.xlu0 %423, %v21
    %v425 = vpop.permute.xlu0 %424
    %427 = vset.pattern.permute.xlu0 4
    %428 = vperm.xlu0 %427, %v22
    %v429 = vpop.permute.xlu0 %428
    %431 = vset.pattern.permute.xlu0 4
    %432 = vperm.xlu0 %431, %v23
    %v433 = vpop.permute.xlu0 %432
    %435 = vset.pattern.permute.xlu0 4
    %436 = vperm.xlu0 %435, %v24
    %v437 = vpop.permute.xlu0 %436
    %439 = vset.pattern.permute.xlu0 4
    %440 = vperm.xlu0 %439, %v25
    %v441 = vpop.permute.xlu0 %440
    %443 = vset.pattern.permute.xlu0 4
    %444 = vperm.xlu0 %443, %v26
    %v445 = vpop.permute.xlu0 %444
    %447 = vset.pattern.permute.xlu0 4
    %448 = vperm.xlu0 %447, %v27
    %v449 = vpop.permute.xlu0 %448
    %v451 = vperm.slane %v386, 0
    %v452 = vsub.f32 %v389, %v451
    %v453 = vsub.f32 %v393, %v451
    %v454 = vsub.f32 %v397, %v451
    %v455 = vsub.f32 %v401, %v451
    %v456 = vsub.f32 %v405, %v451
    %v457 = vsub.f32 %v409, %v451
    %v458 = vsub.f32 %v413, %v451
    %v459 = vsub.f32 %v417, %v451
    %v460 = vsub.f32 %v421, %v451
    %v461 = vsub.f32 %v425, %v451
    %v462 = vsub.f32 %v429, %v451
    %v463 = vsub.f32 %v433, %v451
    %v464 = vsub.f32 %v437, %v451
    %v465 = vsub.f32 %v441, %v451
    %v466 = vsub.f32 %v445, %v451
    %v467 = vsub.f32 %v449, %v451
    %v468 = vmul.f32 %v452, %v452
    %v469 = vmul.f32 %v453, %v453
    %v470 = vmul.f32 %v454, %v454
    %v471 = vmul.f32 %v455, %v455
    %v472 = vmul.f32 %v456, %v456
    %v473 = vmul.f32 %v457, %v457
    %v474 = vmul.f32 %v458, %v458
    %v475 = vmul.f32 %v459, %v459
    %v476 = vmul.f32 %v460, %v460
    %v477 = vmul.f32 %v461, %v461
    %v478 = vmul.f32 %v462, %v462
    %v479 = vmul.f32 %v463, %v463
    %v480 = vmul.f32 %v464, %v464
    %v481 = vmul.f32 %v465, %v465
    %v482 = vmul.f32 %v466, %v466
    %v483 = vmul.f32 %v467, %v467
    %v484 = vadd.f32 %v256, %v468
    %v485 = vadd.f32 %v257, %v469
    %v486 = vadd.f32 %v258, %v470
    %v487 = vadd.f32 %v259, %v471
    %v488 = vadd.f32 %v260, %v472
    %v489 = vadd.f32 %v261, %v473
    %v490 = vadd.f32 %v262, %v474
    %v491 = vadd.f32 %v263, %v475
    %v492 = vadd.f32 %v264, %v476
    %v493 = vadd.f32 %v265, %v477
    %v494 = vadd.f32 %v266, %v478
    %v495 = vadd.f32 %v267, %v479
    %v496 = vadd.f32 %v268, %v480
    %v497 = vadd.f32 %v269, %v481
    %v498 = vadd.f32 %v270, %v482
    %v499 = vadd.f32 %v271, %v483
    %v500 = vld [vmem:[%s0 + $0x2] sm:$0x1]
    %501 = vset.pattern.permute.xlu0 2
    %502 = vperm.xlu0 %501, %v12
    %v503 = vpop.permute.xlu0 %502
    %505 = vset.pattern.permute.xlu0 2
    %506 = vperm.xlu0 %505, %v13
    %v507 = vpop.permute.xlu0 %506
    %509 = vset.pattern.permute.xlu0 2
    %510 = vperm.xlu0 %509, %v14
    %v511 = vpop.permute.xlu0 %510
    %513 = vset.pattern.permute.xlu0 2
    %514 = vperm.xlu0 %513, %v15
    %v515 = vpop.permute.xlu0 %514
    %517 = vset.pattern.permute.xlu0 2
    %518 = vperm.xlu0 %517, %v16
    %v519 = vpop.permute.xlu0 %518
    %521 = vset.pattern.permute.xlu0 2
    %522 = vperm.xlu0 %521, %v17
    %v523 = vpop.permute.xlu0 %522
    %525 = vset.pattern.permute.xlu0 2
    %526 = vperm.xlu0 %525, %v18
    %v527 = vpop.permute.xlu0 %526
    %529 = vset.pattern.permute.xlu0 2
    %530 = vperm.xlu0 %529, %v19
    %v531 = vpop.permute.xlu0 %530
    %533 = vset.pattern.permute.xlu0 2
    %534 = vperm.xlu0 %533, %v20
    %v535 = vpop.permute.xlu0 %534
    %537 = vset.pattern.permute.xlu0 2
    %538 = vperm.xlu0 %537, %v21
    %v539 = vpop.permute.xlu0 %538
    %541 = vset.pattern.permute.xlu0 2
    %542 = vperm.xlu0 %541, %v22
    %v543 = vpop.permute.xlu0 %542
    %545 = vset.pattern.permute.xlu0 2
    %546 = vperm.xlu0 %545, %v23
    %v547 = vpop.permute.xlu0 %546
    %549 = vset.pattern.permute.xlu0 2
    %550 = vperm.xlu0 %549, %v24
    %v551 = vpop.permute.xlu0 %550
    %553 = vset.pattern.permute.xlu0 2
    %554 = vperm.xlu0 %553, %v25
    %v555 = vpop.permute.xlu0 %554
    %557 = vset.pattern.permute.xlu0 2
    %558 = vperm.xlu0 %557, %v26
    %v559 = vpop.permute.xlu0 %558
    %561 = vset.pattern.permute.xlu0 2
    %562 = vperm.xlu0 %561, %v27
    %v563 = vpop.permute.xlu0 %562
    %v565 = vperm.slane %v500, 0
    %v566 = vsub.f32 %v503, %v565
    %v567 = vsub.f32 %v507, %v565
    %v568 = vsub.f32 %v511, %v565
    %v569 = vsub.f32 %v515, %v565
    %v570 = vsub.f32 %v519, %v565
    %v571 = vsub.f32 %v523, %v565
    %v572 = vsub.f32 %v527, %v565
    %v573 = vsub.f32 %v531, %v565
    %v574 = vsub.f32 %v535, %v565
    %v575 = vsub.f32 %v539, %v565
    %v576 = vsub.f32 %v543, %v565
    %v577 = vsub.f32 %v547, %v565
    %v578 = vsub.f32 %v551, %v565
    %v579 = vsub.f32 %v555, %v565
    %v580 = vsub.f32 %v559, %v565
    %v581 = vsub.f32 %v563, %v565
    %v582 = vmul.f32 %v566, %v566
    %v583 = vmul.f32 %v567, %v567
    %v584 = vmul.f32 %v568, %v568
    %v585 = vmul.f32 %v569, %v569
    %v586 = vmul.f32 %v570, %v570
    %v587 = vmul.f32 %v571, %v571
    %v588 = vmul.f32 %v572, %v572
    %v589 = vmul.f32 %v573, %v573
    %v590 = vmul.f32 %v574, %v574
    %v591 = vmul.f32 %v575, %v575
    %v592 = vmul.f32 %v576, %v576
    %v593 = vmul.f32 %v577, %v577
    %v594 = vmul.f32 %v578, %v578
    %v595 = vmul.f32 %v579, %v579
    %v596 = vmul.f32 %v580, %v580
    %v597 = vmul.f32 %v581, %v581
    %v598 = vadd.f32 %v370, %v582
    %v599 = vadd.f32 %v371, %v583
    %v600 = vadd.f32 %v372, %v584
    %v601 = vadd.f32 %v373, %v585
    %v602 = vadd.f32 %v374, %v586
    %v603 = vadd.f32 %v375, %v587
    %v604 = vadd.f32 %v376, %v588
    %v605 = vadd.f32 %v377, %v589
    %v606 = vadd.f32 %v378, %v590
    %v607 = vadd.f32 %v379, %v591
    %v608 = vadd.f32 %v380, %v592
    %v609 = vadd.f32 %v381, %v593
    %v610 = vadd.f32 %v382, %v594
    %v611 = vadd.f32 %v383, %v595
    %v612 = vadd.f32 %v384, %v596
    %v613 = vadd.f32 %v385, %v597
    %v614 = vld [vmem:[%s0 + $0x5] sm:$0x1]
    %615 = vset.pattern.permute.xlu0 5
    %616 = vperm.xlu0 %615, %v12
    %v617 = vpop.permute.xlu0 %616
    %619 = vset.pattern.permute.xlu0 5
    %620 = vperm.xlu0 %619, %v13
    %v621 = vpop.permute.xlu0 %620
    %623 = vset.pattern.permute.xlu0 5
    %624 = vperm.xlu0 %623, %v14
    %v625 = vpop.permute.xlu0 %624
    %627 = vset.pattern.permute.xlu0 5
    %628 = vperm.xlu0 %627, %v15
    %v629 = vpop.permute.xlu0 %628
    %631 = vset.pattern.permute.xlu0 5
    %632 = vperm.xlu0 %631, %v16
    %v633 = vpop.permute.xlu0 %632
    %635 = vset.pattern.permute.xlu0 5
    %636 = vperm.xlu0 %635, %v17
    %v637 = vpop.permute.xlu0 %636
    %639 = vset.pattern.permute.xlu0 5
    %640 = vperm.xlu0 %639, %v18
    %v641 = vpop.permute.xlu0 %640
    %643 = vset.pattern.permute.xlu0 5
    %644 = vperm.xlu0 %643, %v19
    %v645 = vpop.permute.xlu0 %644
    %647 = vset.pattern.permute.xlu0 5
    %648 = vperm.xlu0 %647, %v20
    %v649 = vpop.permute.xlu0 %648
    %651 = vset.pattern.permute.xlu0 5
    %652 = vperm.xlu0 %651, %v21
    %v653 = vpop.permute.xlu0 %652
    %655 = vset.pattern.permute.xlu0 5
    %656 = vperm.xlu0 %655, %v22
    %v657 = vpop.permute.xlu0 %656
    %659 = vset.pattern.permute.xlu0 5
    %660 = vperm.xlu0 %659, %v23
    %v661 = vpop.permute.xlu0 %660
    %663 = vset.pattern.permute.xlu0 5
    %664 = vperm.xlu0 %663, %v24
    %v665 = vpop.permute.xlu0 %664
    %667 = vset.pattern.permute.xlu0 5
    %668 = vperm.xlu0 %667, %v25
    %v669 = vpop.permute.xlu0 %668
    %671 = vset.pattern.permute.xlu0 5
    %672 = vperm.xlu0 %671, %v26
    %v673 = vpop.permute.xlu0 %672
    %675 = vset.pattern.permute.xlu0 5
    %676 = vperm.xlu0 %675, %v27
    %v677 = vpop.permute.xlu0 %676
    %v679 = vperm.slane %v614, 0
    %v680 = vsub.f32 %v617, %v679
    %v681 = vsub.f32 %v621, %v679
    %v682 = vsub.f32 %v625, %v679
    %v683 = vsub.f32 %v629, %v679
    %v684 = vsub.f32 %v633, %v679
    %v685 = vsub.f32 %v637, %v679
    %v686 = vsub.f32 %v641, %v679
    %v687 = vsub.f32 %v645, %v679
    %v688 = vsub.f32 %v649, %v679
    %v689 = vsub.f32 %v653, %v679
    %v690 = vsub.f32 %v657, %v679
    %v691 = vsub.f32 %v661, %v679
    %v692 = vsub.f32 %v665, %v679
    %v693 = vsub.f32 %v669, %v679
    %v694 = vsub.f32 %v673, %v679
    %v695 = vsub.f32 %v677, %v679
    %v696 = vmul.f32 %v680, %v680
    %v697 = vmul.f32 %v681, %v681
    %v698 = vmul.f32 %v682, %v682
    %v699 = vmul.f32 %v683, %v683
    %v700 = vmul.f32 %v684, %v684
    %v701 = vmul.f32 %v685, %v685
    %v702 = vmul.f32 %v686, %v686
    %v703 = vmul.f32 %v687, %v687
    %v704 = vmul.f32 %v688, %v688
    %v705 = vmul.f32 %v689, %v689
    %v706 = vmul.f32 %v690, %v690
    %v707 = vmul.f32 %v691, %v691
    %v708 = vmul.f32 %v692, %v692
    %v709 = vmul.f32 %v693, %v693
    %v710 = vmul.f32 %v694, %v694
    %v711 = vmul.f32 %v695, %v695
    %v712 = vadd.f32 %v484, %v696
    %v713 = vadd.f32 %v485, %v697
    %v714 = vadd.f32 %v486, %v698
    %v715 = vadd.f32 %v487, %v699
    %v716 = vadd.f32 %v488, %v700
    %v717 = vadd.f32 %v489, %v701
    %v718 = vadd.f32 %v490, %v702
    %v719 = vadd.f32 %v491, %v703
    %v720 = vadd.f32 %v492, %v704
    %v721 = vadd.f32 %v493, %v705
    %v722 = vadd.f32 %v494, %v706
    %v723 = vadd.f32 %v495, %v707
    %v724 = vadd.f32 %v496, %v708
    %v725 = vadd.f32 %v497, %v709
    %v726 = vadd.f32 %v498, %v710
    %v727 = vadd.f32 %v499, %v711
    %v728 = vrsqrt.pop %v598
    %v729 = vmul.f32 %v728, %v598
    %v730 = vmul.f32 %v729, %v728
    %v731 = vmul.f32 0.5, %v730
    %v732 = vsub.f32 1.5, %v731
    %v733 = vmul.f32 %v728, %v732
    %v734 = vmul.f32 %v598, %v733
    %vm735 = vcmp.eq.f32.partialorder %v598, inf
    %v736 = vsel %vm735, %v598, %v734
    %vm737 = vcmp.eq.f32.partialorder %v598, 0.0
    %v738 = vand.u32 %v598, 2147483648
    %v739 = vsel %vm737, %v738, %v736
    %v740 = vrsqrt.pop %v599
    %v741 = vmul.f32 %v740, %v599
    %v742 = vmul.f32 %v741, %v740
    %v743 = vmul.f32 0.5, %v742
    %v744 = vsub.f32 1.5, %v743
    %v745 = vmul.f32 %v740, %v744
    %v746 = vmul.f32 %v599, %v745
    %vm747 = vcmp.eq.f32.partialorder %v599, inf
    %v748 = vsel %vm747, %v599, %v746
    %vm749 = vcmp.eq.f32.partialorder %v599, 0.0
    %v750 = vand.u32 %v599, 2147483648
    %v751 = vsel %vm749, %v750, %v748
    %v752 = vrsqrt.pop %v600
    %v753 = vmul.f32 %v752, %v600
    %v754 = vmul.f32 %v753, %v752
    %v755 = vmul.f32 0.5, %v754
    %v756 = vsub.f32 1.5, %v755
    %v757 = vmul.f32 %v752, %v756
    %v758 = vmul.f32 %v600, %v757
    %vm759 = vcmp.eq.f32.partialorder %v600, inf
    %v760 = vsel %vm759, %v600, %v758
    %vm761 = vcmp.eq.f32.partialorder %v600, 0.0
    %v762 = vand.u32 %v600, 2147483648
    %v763 = vsel %vm761, %v762, %v760
    %v764 = vrsqrt.pop %v601
    %v765 = vmul.f32 %v764, %v601
    %v766 = vmul.f32 %v765, %v764
    %v767 = vmul.f32 0.5, %v766
    %v768 = vsub.f32 1.5, %v767
    %v769 = vmul.f32 %v764, %v768
    %v770 = vmul.f32 %v601, %v769
    %vm771 = vcmp.eq.f32.partialorder %v601, inf
    %v772 = vsel %vm771, %v601, %v770
    %vm773 = vcmp.eq.f32.partialorder %v601, 0.0
    %v774 = vand.u32 %v601, 2147483648
    %v775 = vsel %vm773, %v774, %v772
    %v776 = vrsqrt.pop %v602
    %v777 = vmul.f32 %v776, %v602
    %v778 = vmul.f32 %v777, %v776
    %v779 = vmul.f32 0.5, %v778
    %v780 = vsub.f32 1.5, %v779
    %v781 = vmul.f32 %v776, %v780
    %v782 = vmul.f32 %v602, %v781
    %vm783 = vcmp.eq.f32.partialorder %v602, inf
    %v784 = vsel %vm783, %v602, %v782
    %vm785 = vcmp.eq.f32.partialorder %v602, 0.0
    %v786 = vand.u32 %v602, 2147483648
    %v787 = vsel %vm785, %v786, %v784
    %v788 = vrsqrt.pop %v603
    %v789 = vmul.f32 %v788, %v603
    %v790 = vmul.f32 %v789, %v788
    %v791 = vmul.f32 0.5, %v790
    %v792 = vsub.f32 1.5, %v791
    %v793 = vmul.f32 %v788, %v792
    %v794 = vmul.f32 %v603, %v793
    %vm795 = vcmp.eq.f32.partialorder %v603, inf
    %v796 = vsel %vm795, %v603, %v794
    %vm797 = vcmp.eq.f32.partialorder %v603, 0.0
    %v798 = vand.u32 %v603, 2147483648
    %v799 = vsel %vm797, %v798, %v796
    %v800 = vrsqrt.pop %v604
    %v801 = vmul.f32 %v800, %v604
    %v802 = vmul.f32 %v801, %v800
    %v803 = vmul.f32 0.5, %v802
    %v804 = vsub.f32 1.5, %v803
    %v805 = vmul.f32 %v800, %v804
    %v806 = vmul.f32 %v604, %v805
    %vm807 = vcmp.eq.f32.partialorder %v604, inf
    %v808 = vsel %vm807, %v604, %v806
    %vm809 = vcmp.eq.f32.partialorder %v604, 0.0
    %v810 = vand.u32 %v604, 2147483648
    %v811 = vsel %vm809, %v810, %v808
    %v812 = vrsqrt.pop %v605
    %v813 = vmul.f32 %v812, %v605
    %v814 = vmul.f32 %v813, %v812
    %v815 = vmul.f32 0.5, %v814
    %v816 = vsub.f32 1.5, %v815
    %v817 = vmul.f32 %v812, %v816
    %v818 = vmul.f32 %v605, %v817
    %vm819 = vcmp.eq.f32.partialorder %v605, inf
    %v820 = vsel %vm819, %v605, %v818
    %vm821 = vcmp.eq.f32.partialorder %v605, 0.0
    %v822 = vand.u32 %v605, 2147483648
    %v823 = vsel %vm821, %v822, %v820
    %v824 = vrsqrt.pop %v606
    %v825 = vmul.f32 %v824, %v606
    %v826 = vmul.f32 %v825, %v824
    %v827 = vmul.f32 0.5, %v826
    %v828 = vsub.f32 1.5, %v827
    %v829 = vmul.f32 %v824, %v828
    %v830 = vmul.f32 %v606, %v829
    %vm831 = vcmp.eq.f32.partialorder %v606, inf
    %v832 = vsel %vm831, %v606, %v830
    %vm833 = vcmp.eq.f32.partialorder %v606, 0.0
    %v834 = vand.u32 %v606, 2147483648
    %v835 = vsel %vm833, %v834, %v832
    %v836 = vrsqrt.pop %v607
    %v837 = vmul.f32 %v836, %v607
    %v838 = vmul.f32 %v837, %v836
    %v839 = vmul.f32 0.5, %v838
    %v840 = vsub.f32 1.5, %v839
    %v841 = vmul.f32 %v836, %v840
    %v842 = vmul.f32 %v607, %v841
    %vm843 = vcmp.eq.f32.partialorder %v607, inf
    %v844 = vsel %vm843, %v607, %v842
    %vm845 = vcmp.eq.f32.partialorder %v607, 0.0
    %v846 = vand.u32 %v607, 2147483648
    %v847 = vsel %vm845, %v846, %v844
    %v848 = vrsqrt.pop %v608
    %v849 = vmul.f32 %v848, %v608
    %v850 = vmul.f32 %v849, %v848
    %v851 = vmul.f32 0.5, %v850
    %v852 = vsub.f32 1.5, %v851
    %v853 = vmul.f32 %v848, %v852
    %v854 = vmul.f32 %v608, %v853
    %vm855 = vcmp.eq.f32.partialorder %v608, inf
    %v856 = vsel %vm855, %v608, %v854
    %vm857 = vcmp.eq.f32.partialorder %v608, 0.0
    %v858 = vand.u32 %v608, 2147483648
    %v859 = vsel %vm857, %v858, %v856
    %v860 = vrsqrt.pop %v609
    %v861 = vmul.f32 %v860, %v609
    %v862 = vmul.f32 %v861, %v860
    %v863 = vmul.f32 0.5, %v862
    %v864 = vsub.f32 1.5, %v863
    %v865 = vmul.f32 %v860, %v864
    %v866 = vmul.f32 %v609, %v865
    %vm867 = vcmp.eq.f32.partialorder %v609, inf
    %v868 = vsel %vm867, %v609, %v866
    %vm869 = vcmp.eq.f32.partialorder %v609, 0.0
    %v870 = vand.u32 %v609, 2147483648
    %v871 = vsel %vm869, %v870, %v868
    %v872 = vrsqrt.pop %v610
    %v873 = vmul.f32 %v872, %v610
    %v874 = vmul.f32 %v873, %v872
    %v875 = vmul.f32 0.5, %v874
    %v876 = vsub.f32 1.5, %v875
    %v877 = vmul.f32 %v872, %v876
    %v878 = vmul.f32 %v610, %v877
    %vm879 = vcmp.eq.f32.partialorder %v610, inf
    %v880 = vsel %vm879, %v610, %v878
    %vm881 = vcmp.eq.f32.partialorder %v610, 0.0
    %v882 = vand.u32 %v610, 2147483648
    %v883 = vsel %vm881, %v882, %v880
    %v884 = vrsqrt.pop %v611
    %v885 = vmul.f32 %v884, %v611
    %v886 = vmul.f32 %v885, %v884
    %v887 = vmul.f32 0.5, %v886
    %v888 = vsub.f32 1.5, %v887
    %v889 = vmul.f32 %v884, %v888
    %v890 = vmul.f32 %v611, %v889
    %vm891 = vcmp.eq.f32.partialorder %v611, inf
    %v892 = vsel %vm891, %v611, %v890
    %vm893 = vcmp.eq.f32.partialorder %v611, 0.0
    %v894 = vand.u32 %v611, 2147483648
    %v895 = vsel %vm893, %v894, %v892
    %v896 = vrsqrt.pop %v612
    %v897 = vmul.f32 %v896, %v612
    %v898 = vmul.f32 %v897, %v896
    %v899 = vmul.f32 0.5, %v898
    %v900 = vsub.f32 1.5, %v899
    %v901 = vmul.f32 %v896, %v900
    %v902 = vmul.f32 %v612, %v901
    %vm903 = vcmp.eq.f32.partialorder %v612, inf
    %v904 = vsel %vm903, %v612, %v902
    %vm905 = vcmp.eq.f32.partialorder %v612, 0.0
    %v906 = vand.u32 %v612, 2147483648
    %v907 = vsel %vm905, %v906, %v904
    %v908 = vrsqrt.pop %v613
    %v909 = vmul.f32 %v908, %v613
    %v910 = vmul.f32 %v909, %v908
    %v911 = vmul.f32 0.5, %v910
    %v912 = vsub.f32 1.5, %v911
    %v913 = vmul.f32 %v908, %v912
    %v914 = vmul.f32 %v613, %v913
    %vm915 = vcmp.eq.f32.partialorder %v613, inf
    %v916 = vsel %vm915, %v613, %v914
    %vm917 = vcmp.eq.f32.partialorder %v613, 0.0
    %v918 = vand.u32 %v613, 2147483648
    %v919 = vsel %vm917, %v918, %v916
    %v920 = vrsqrt.pop %v712
    %v921 = vmul.f32 %v920, %v712
    %v922 = vmul.f32 %v921, %v920
    %v923 = vmul.f32 0.5, %v922
    %v924 = vsub.f32 1.5, %v923
    %v925 = vmul.f32 %v920, %v924
    %v926 = vmul.f32 %v712, %v925
    %vm927 = vcmp.eq.f32.partialorder %v712, inf
    %v928 = vsel %vm927, %v712, %v926
    %vm929 = vcmp.eq.f32.partialorder %v712, 0.0
    %v930 = vand.u32 %v712, 2147483648
    %v931 = vsel %vm929, %v930, %v928
    %v932 = vrsqrt.pop %v713
    %v933 = vmul.f32 %v932, %v713
    %v934 = vmul.f32 %v933, %v932
    %v935 = vmul.f32 0.5, %v934
    %v936 = vsub.f32 1.5, %v935
    %v937 = vmul.f32 %v932, %v936
    %v938 = vmul.f32 %v713, %v937
    %vm939 = vcmp.eq.f32.partialorder %v713, inf
    %v940 = vsel %vm939, %v713, %v938
    %vm941 = vcmp.eq.f32.partialorder %v713, 0.0
    %v942 = vand.u32 %v713, 2147483648
    %v943 = vsel %vm941, %v942, %v940
    %v944 = vrsqrt.pop %v714
    %v945 = vmul.f32 %v944, %v714
    %v946 = vmul.f32 %v945, %v944
    %v947 = vmul.f32 0.5, %v946
    %v948 = vsub.f32 1.5, %v947
    %v949 = vmul.f32 %v944, %v948
    %v950 = vmul.f32 %v714, %v949
    %vm951 = vcmp.eq.f32.partialorder %v714, inf
    %v952 = vsel %vm951, %v714, %v950
    %vm953 = vcmp.eq.f32.partialorder %v714, 0.0
    %v954 = vand.u32 %v714, 2147483648
    %v955 = vsel %vm953, %v954, %v952
    %v956 = vrsqrt.pop %v715
    %v957 = vmul.f32 %v956, %v715
    %v958 = vmul.f32 %v957, %v956
    %v959 = vmul.f32 0.5, %v958
    %v960 = vsub.f32 1.5, %v959
    %v961 = vmul.f32 %v956, %v960
    %v962 = vmul.f32 %v715, %v961
    %vm963 = vcmp.eq.f32.partialorder %v715, inf
    %v964 = vsel %vm963, %v715, %v962
    %vm965 = vcmp.eq.f32.partialorder %v715, 0.0
    %v966 = vand.u32 %v715, 2147483648
    %v967 = vsel %vm965, %v966, %v964
    %v968 = vrsqrt.pop %v716
    %v969 = vmul.f32 %v968, %v716
    %v970 = vmul.f32 %v969, %v968
    %v971 = vmul.f32 0.5, %v970
    %v972 = vsub.f32 1.5, %v971
    %v973 = vmul.f32 %v968, %v972
    %v974 = vmul.f32 %v716, %v973
    %vm975 = vcmp.eq.f32.partialorder %v716, inf
    %v976 = vsel %vm975, %v716, %v974
    %vm977 = vcmp.eq.f32.partialorder %v716, 0.0
    %v978 = vand.u32 %v716, 2147483648
    %v979 = vsel %vm977, %v978, %v976
    %v980 = vrsqrt.pop %v717
    %v981 = vmul.f32 %v980, %v717
    %v982 = vmul.f32 %v981, %v980
    %v983 = vmul.f32 0.5, %v982
    %v984 = vsub.f32 1.5, %v983
    %v985 = vmul.f32 %v980, %v984
    %v986 = vmul.f32 %v717, %v985
    %vm987 = vcmp.eq.f32.partialorder %v717, inf
    %v988 = vsel %vm987, %v717, %v986
    %vm989 = vcmp.eq.f32.partialorder %v717, 0.0
    %v990 = vand.u32 %v717, 2147483648
    %v991 = vsel %vm989, %v990, %v988
    %v992 = vrsqrt.pop %v718
    %v993 = vmul.f32 %v992, %v718
    %v994 = vmul.f32 %v993, %v992
    %v995 = vmul.f32 0.5, %v994
    %v996 = vsub.f32 1.5, %v995
    %v997 = vmul.f32 %v992, %v996
    %v998 = vmul.f32 %v718, %v997
    %vm999 = vcmp.eq.f32.partialorder %v718, inf
    %v1000 = vsel %vm999, %v718, %v998
    %vm1001 = vcmp.eq.f32.partialorder %v718, 0.0
    %v1002 = vand.u32 %v718, 2147483648
    %v1003 = vsel %vm1001, %v1002, %v1000
    %v1004 = vrsqrt.pop %v719
    %v1005 = vmul.f32 %v1004, %v719
    %v1006 = vmul.f32 %v1005, %v1004
    %v1007 = vmul.f32 0.5, %v1006
    %v1008 = vsub.f32 1.5, %v1007
    %v1009 = vmul.f32 %v1004, %v1008
    %v1010 = vmul.f32 %v719, %v1009
    %vm1011 = vcmp.eq.f32.partialorder %v719, inf
    %v1012 = vsel %vm1011, %v719, %v1010
    %vm1013 = vcmp.eq.f32.partialorder %v719, 0.0
    %v1014 = vand.u32 %v719, 2147483648
    %v1015 = vsel %vm1013, %v1014, %v1012
    %v1016 = vrsqrt.pop %v720
    %v1017 = vmul.f32 %v1016, %v720
    %v1018 = vmul.f32 %v1017, %v1016
    %v1019 = vmul.f32 0.5, %v1018
    %v1020 = vsub.f32 1.5, %v1019
    %v1021 = vmul.f32 %v1016, %v1020
    %v1022 = vmul.f32 %v720, %v1021
    %vm1023 = vcmp.eq.f32.partialorder %v720, inf
    %v1024 = vsel %vm1023, %v720, %v1022
    %vm1025 = vcmp.eq.f32.partialorder %v720, 0.0
    %v1026 = vand.u32 %v720, 2147483648
    %v1027 = vsel %vm1025, %v1026, %v1024
    %v1028 = vrsqrt.pop %v721
    %v1029 = vmul.f32 %v1028, %v721
    %v1030 = vmul.f32 %v1029, %v1028
    %v1031 = vmul.f32 0.5, %v1030
    %v1032 = vsub.f32 1.5, %v1031
    %v1033 = vmul.f32 %v1028, %v1032
    %v1034 = vmul.f32 %v721, %v1033
    %vm1035 = vcmp.eq.f32.partialorder %v721, inf
    %v1036 = vsel %vm1035, %v721, %v1034
    %vm1037 = vcmp.eq.f32.partialorder %v721, 0.0
    %v1038 = vand.u32 %v721, 2147483648
    %v1039 = vsel %vm1037, %v1038, %v1036
    %v1040 = vrsqrt.pop %v722
    %v1041 = vmul.f32 %v1040, %v722
    %v1042 = vmul.f32 %v1041, %v1040
    %v1043 = vmul.f32 0.5, %v1042
    %v1044 = vsub.f32 1.5, %v1043
    %v1045 = vmul.f32 %v1040, %v1044
    %v1046 = vmul.f32 %v722, %v1045
    %vm1047 = vcmp.eq.f32.partialorder %v722, inf
    %v1048 = vsel %vm1047, %v722, %v1046
    %vm1049 = vcmp.eq.f32.partialorder %v722, 0.0
    %v1050 = vand.u32 %v722, 2147483648
    %v1051 = vsel %vm1049, %v1050, %v1048
    %v1052 = vrsqrt.pop %v723
    %v1053 = vmul.f32 %v1052, %v723
    %v1054 = vmul.f32 %v1053, %v1052
    %v1055 = vmul.f32 0.5, %v1054
    %v1056 = vsub.f32 1.5, %v1055
    %v1057 = vmul.f32 %v1052, %v1056
    %v1058 = vmul.f32 %v723, %v1057
    %vm1059 = vcmp.eq.f32.partialorder %v723, inf
    %v1060 = vsel %vm1059, %v723, %v1058
    %vm1061 = vcmp.eq.f32.partialorder %v723, 0.0
    %v1062 = vand.u32 %v723, 2147483648
    %v1063 = vsel %vm1061, %v1062, %v1060
    %v1064 = vrsqrt.pop %v724
    %v1065 = vmul.f32 %v1064, %v724
    %v1066 = vmul.f32 %v1065, %v1064
    %v1067 = vmul.f32 0.5, %v1066
    %v1068 = vsub.f32 1.5, %v1067
    %v1069 = vmul.f32 %v1064, %v1068
    %v1070 = vmul.f32 %v724, %v1069
    %vm1071 = vcmp.eq.f32.partialorder %v724, inf
    %v1072 = vsel %vm1071, %v724, %v1070
    %vm1073 = vcmp.eq.f32.partialorder %v724, 0.0
    %v1074 = vand.u32 %v724, 2147483648
    %v1075 = vsel %vm1073, %v1074, %v1072
    %v1076 = vrsqrt.pop %v725
    %v1077 = vmul.f32 %v1076, %v725
    %v1078 = vmul.f32 %v1077, %v1076
    %v1079 = vmul.f32 0.5, %v1078
    %v1080 = vsub.f32 1.5, %v1079
    %v1081 = vmul.f32 %v1076, %v1080
    %v1082 = vmul.f32 %v725, %v1081
    %vm1083 = vcmp.eq.f32.partialorder %v725, inf
    %v1084 = vsel %vm1083, %v725, %v1082
    %vm1085 = vcmp.eq.f32.partialorder %v725, 0.0
    %v1086 = vand.u32 %v725, 2147483648
    %v1087 = vsel %vm1085, %v1086, %v1084
    %v1088 = vrsqrt.pop %v726
    %v1089 = vmul.f32 %v1088, %v726
    %v1090 = vmul.f32 %v1089, %v1088
    %v1091 = vmul.f32 0.5, %v1090
    %v1092 = vsub.f32 1.5, %v1091
    %v1093 = vmul.f32 %v1088, %v1092
    %v1094 = vmul.f32 %v726, %v1093
    %vm1095 = vcmp.eq.f32.partialorder %v726, inf
    %v1096 = vsel %vm1095, %v726, %v1094
    %vm1097 = vcmp.eq.f32.partialorder %v726, 0.0
    %v1098 = vand.u32 %v726, 2147483648
    %v1099 = vsel %vm1097, %v1098, %v1096
    %v1100 = vrsqrt.pop %v727
    %v1101 = vmul.f32 %v1100, %v727
    %v1102 = vmul.f32 %v1101, %v1100
    %v1103 = vmul.f32 0.5, %v1102
    %v1104 = vsub.f32 1.5, %v1103
    %v1105 = vmul.f32 %v1100, %v1104
    %v1106 = vmul.f32 %v727, %v1105
    %vm1107 = vcmp.eq.f32.partialorder %v727, inf
    %v1108 = vsel %vm1107, %v727, %v1106
    %vm1109 = vcmp.eq.f32.partialorder %v727, 0.0
    %v1110 = vand.u32 %v727, 2147483648
    %v1111 = vsel %vm1109, %v1110, %v1108
    %v1112 = vsub.f32 %v739, %v931
    %v1113 = vsub.f32 %v751, %v943
    %v1114 = vsub.f32 %v763, %v955
    %v1115 = vsub.f32 %v775, %v967
    %v1116 = vsub.f32 %v787, %v979
    %v1117 = vsub.f32 %v799, %v991
    %v1118 = vsub.f32 %v811, %v1003
    %v1119 = vsub.f32 %v823, %v1015
    %v1120 = vsub.f32 %v835, %v1027
    %v1121 = vsub.f32 %v847, %v1039
    %v1122 = vsub.f32 %v859, %v1051
    %v1123 = vsub.f32 %v871, %v1063
    %v1124 = vsub.f32 %v883, %v1075
    %v1125 = vsub.f32 %v895, %v1087
    %v1126 = vsub.f32 %v907, %v1099
    %v1127 = vsub.f32 %v919, %v1111
    %v1128 = vmul.f32 %v1112, %v1112
    %v1129 = vmul.f32 %v1113, %v1113
    %v1130 = vmul.f32 %v1114, %v1114
    %v1131 = vmul.f32 %v1115, %v1115
    %v1132 = vmul.f32 %v1116, %v1116
    %v1133 = vmul.f32 %v1117, %v1117
    %v1134 = vmul.f32 %v1118, %v1118
    %v1135 = vmul.f32 %v1119, %v1119
    %v1136 = vmul.f32 %v1120, %v1120
    %v1137 = vmul.f32 %v1121, %v1121
    %v1138 = vmul.f32 %v1122, %v1122
    %v1139 = vmul.f32 %v1123, %v1123
    %v1140 = vmul.f32 %v1124, %v1124
    %v1141 = vmul.f32 %v1125, %v1125
    %v1142 = vmul.f32 %v1126, %v1126
    %v1143 = vmul.f32 %v1127, %v1127
    %v1144 = vrcp.pop 0.0022222223
    %v1145 = vmul.f32 0.0022222223, %v1144
    %v1146 = vsub.f32 1.0, %v1145
    %v1147 = vmul.f32 %v1144, %v1146
    %v1148 = vadd.f32 %v1144, %v1147
    %vm1149 = vweird.f32 %v1144
    %v1150 = vsel %vm1149, %v1144, %v1148
    %v1151 = vmul.f32 %v1128, %v1150
    %v1152 = vmul.f32 %v1129, %v1150
    %v1153 = vmul.f32 %v1130, %v1150
    %v1154 = vmul.f32 %v1131, %v1150
    %v1155 = vmul.f32 %v1132, %v1150
    %v1156 = vmul.f32 %v1133, %v1150
    %v1157 = vmul.f32 %v1134, %v1150
    %v1158 = vmul.f32 %v1135, %v1150
    %v1159 = vmul.f32 %v1136, %v1150
    %v1160 = vmul.f32 %v1137, %v1150
    %v1161 = vmul.f32 %v1138, %v1150
    %v1162 = vmul.f32 %v1139, %v1150
    %v1163 = vmul.f32 %v1140, %v1150
    %v1164 = vmul.f32 %v1141, %v1150
    %v1165 = vmul.f32 %v1142, %v1150
    %v1166 = vmul.f32 %v1143, %v1150
    %v1167 = vsub.f32 4.5, %v1151
    %v1168 = vsub.f32 4.5, %v1152
    %v1169 = vsub.f32 4.5, %v1153
    %v1170 = vsub.f32 4.5, %v1154
    %v1171 = vsub.f32 4.5, %v1155
    %v1172 = vsub.f32 4.5, %v1156
    %v1173 = vsub.f32 4.5, %v1157
    %v1174 = vsub.f32 4.5, %v1158
    %v1175 = vsub.f32 4.5, %v1159
    %v1176 = vsub.f32 4.5, %v1160
    %v1177 = vsub.f32 4.5, %v1161
    %v1178 = vsub.f32 4.5, %v1162
    %v1179 = vsub.f32 4.5, %v1163
    %v1180 = vsub.f32 4.5, %v1164
    %v1181 = vsub.f32 4.5, %v1165
    %v1182 = vsub.f32 4.5, %v1166
    %v1183 = vmax.f32 %v1167, 0.0
    %v1184 = vmax.f32 %v1168, 0.0
    %v1185 = vmax.f32 %v1169, 0.0
    %v1186 = vmax.f32 %v1170, 0.0
    %v1187 = vmax.f32 %v1171, 0.0
    %v1188 = vmax.f32 %v1172, 0.0
    %v1189 = vmax.f32 %v1173, 0.0
    %v1190 = vmax.f32 %v1174, 0.0
    %v1191 = vmax.f32 %v1175, 0.0
    %v1192 = vmax.f32 %v1176, 0.0
    %v1193 = vmax.f32 %v1177, 0.0
    %v1194 = vmax.f32 %v1178, 0.0
    %v1195 = vmax.f32 %v1179, 0.0
    %v1196 = vmax.f32 %v1180, 0.0
    %v1197 = vmax.f32 %v1181, 0.0
    %v1198 = vmax.f32 %v1182, 0.0
    %v1199 = vlaneseq
    %v1200 = vshrl.u32 %v1199, 7
    %v1201 = vadd.s32 %v1200, 8
    %v1202 = vadd.s32 %v1200, 16
    %v1203 = vadd.s32 %v1200, 24
    %v1204 = vadd.s32 %v1200, 32
    %v1205 = vadd.s32 %v1200, 40
    %v1206 = vadd.s32 %v1200, 48
    %v1207 = vadd.s32 %v1200, 56
    %v1208 = vadd.s32 %v1200, 64
    %v1209 = vadd.s32 %v1200, 72
    %v1210 = vadd.s32 %v1200, 80
    %v1211 = vadd.s32 %v1200, 88
    %v1212 = vadd.s32 %v1200, 96
    %v1213 = vadd.s32 %v1200, 104
    %v1214 = vadd.s32 %v1200, 112
    %v1215 = vadd.s32 %v1200, 120
    %v1216 = vlaneseq
    %v1217 = vand.u32 %v1216, 127
    %vm1218 = vcmp.ne.s32.totalorder %v1200, %v1217
    %vm1219 = vcmp.ne.s32.totalorder %v1201, %v1217
    %vm1220 = vcmp.ne.s32.totalorder %v1202, %v1217
    %vm1221 = vcmp.ne.s32.totalorder %v1203, %v1217
    %vm1222 = vcmp.ne.s32.totalorder %v1204, %v1217
    %vm1223 = vcmp.ne.s32.totalorder %v1205, %v1217
    %vm1224 = vcmp.ne.s32.totalorder %v1206, %v1217
    %vm1225 = vcmp.ne.s32.totalorder %v1207, %v1217
    %vm1226 = vcmp.ne.s32.totalorder %v1208, %v1217
    %vm1227 = vcmp.ne.s32.totalorder %v1209, %v1217
    %vm1228 = vcmp.ne.s32.totalorder %v1210, %v1217
    %vm1229 = vcmp.ne.s32.totalorder %v1211, %v1217
    %vm1230 = vcmp.ne.s32.totalorder %v1212, %v1217
    %vm1231 = vcmp.ne.s32.totalorder %v1213, %v1217
    %vm1232 = vcmp.ne.s32.totalorder %v1214, %v1217
    %vm1233 = vcmp.ne.s32.totalorder %v1215, %v1217
    %vm1234 = vcmp.lt.s32.totalorder %v1200, 128
    %vm1235 = vcmp.lt.s32.totalorder %v1201, 128
    %vm1236 = vcmp.lt.s32.totalorder %v1202, 128
    %vm1237 = vcmp.lt.s32.totalorder %v1203, 128
    %vm1238 = vcmp.lt.s32.totalorder %v1204, 128
    %vm1239 = vcmp.lt.s32.totalorder %v1205, 128
    %vm1240 = vcmp.lt.s32.totalorder %v1206, 128
    %vm1241 = vcmp.lt.s32.totalorder %v1207, 128
    %vm1242 = vcmp.lt.s32.totalorder %v1208, 128
    %vm1243 = vcmp.lt.s32.totalorder %v1209, 128
    %vm1244 = vcmp.lt.s32.totalorder %v1210, 128
    %vm1245 = vcmp.lt.s32.totalorder %v1211, 128
    %vm1246 = vcmp.lt.s32.totalorder %v1212, 128
    %vm1247 = vcmp.lt.s32.totalorder %v1213, 128
    %vm1248 = vcmp.lt.s32.totalorder %v1214, 128
    %vm1249 = vcmp.lt.s32.totalorder %v1215, 128
    %vm1250 = vmand %vm1218, %vm1234
    %vm1251 = vmand %vm1219, %vm1235
    %vm1252 = vmand %vm1220, %vm1236
    %vm1253 = vmand %vm1221, %vm1237
    %vm1254 = vmand %vm1222, %vm1238
    %vm1255 = vmand %vm1223, %vm1239
    %vm1256 = vmand %vm1224, %vm1240
    %vm1257 = vmand %vm1225, %vm1241
    %vm1258 = vmand %vm1226, %vm1242
    %vm1259 = vmand %vm1227, %vm1243
    %vm1260 = vmand %vm1228, %vm1244
    %vm1261 = vmand %vm1229, %vm1245
    %vm1262 = vmand %vm1230, %vm1246
    %vm1263 = vmand %vm1231, %vm1247
    %vm1264 = vmand %vm1232, %vm1248
    %vm1265 = vmand %vm1233, %vm1249
    %vm1266 = vcmp.lt.s32.totalorder %v1217, 128
    %vm1267 = vmand %vm1250, %vm1266
    %vm1268 = vmand %vm1251, %vm1266
    %vm1269 = vmand %vm1252, %vm1266
    %vm1270 = vmand %vm1253, %vm1266
    %vm1271 = vmand %vm1254, %vm1266
    %vm1272 = vmand %vm1255, %vm1266
    %vm1273 = vmand %vm1256, %vm1266
    %vm1274 = vmand %vm1257, %vm1266
    %vm1275 = vmand %vm1258, %vm1266
    %vm1276 = vmand %vm1259, %vm1266
    %vm1277 = vmand %vm1260, %vm1266
    %vm1278 = vmand %vm1261, %vm1266
    %vm1279 = vmand %vm1262, %vm1266
    %vm1280 = vmand %vm1263, %vm1266
    %vm1281 = vmand %vm1264, %vm1266
    %vm1282 = vmand %vm1265, %vm1266
    %v1283 = vsel %vm1267, %v1183, 0.0
    %v1284 = vsel %vm1268, %v1184, 0.0
    %v1285 = vsel %vm1269, %v1185, 0.0
    %v1286 = vsel %vm1270, %v1186, 0.0
    %v1287 = vsel %vm1271, %v1187, 0.0
    %v1288 = vsel %vm1272, %v1188, 0.0
    %v1289 = vsel %vm1273, %v1189, 0.0
    %v1290 = vsel %vm1274, %v1190, 0.0
    %v1291 = vsel %vm1275, %v1191, 0.0
    %v1292 = vsel %vm1276, %v1192, 0.0
    %v1293 = vsel %vm1277, %v1193, 0.0
    %v1294 = vsel %vm1278, %v1194, 0.0
    %v1295 = vsel %vm1279, %v1195, 0.0
    %v1296 = vsel %vm1280, %v1196, 0.0
    %v1297 = vsel %vm1281, %v1197, 0.0
    %v1298 = vsel %vm1282, %v1198, 0.0
    %1299 = vmatpush.msra.mxu0 %v1298
    %1300 = vmatpush.msra.mxu0 %v1297
    %1301 = vmatpush.msra.mxu0 %v1296
    %1302 = vmatpush.msra.mxu0 %v1295
    %1303 = vmatpush.msra.mxu0 %v1294
    %1304 = vmatpush.msra.mxu0 %v1293
    %1305 = vmatpush.msra.mxu0 %v1292
    %1306 = vmatpush.msra.mxu0 %v1291
    %1307 = vmatpush.msra.mxu0 %v1290
    %1308 = vmatpush.msra.mxu0 %v1289
    %1309 = vmatpush.msra.mxu0 %v1288
    %1310 = vmatpush.msra.mxu0 %v1287
    %1311 = vmatpush.msra.mxu0 %v1286
    %1312 = vmatpush.msra.mxu0 %v1285
    %1313 = vmatpush.msra.mxu0 %v1284
    %1314 = vmatpush.msra.mxu0 %v1283
    %1315 = vmatmul.f32.gmra.mxu0 1.0
    %v1316 = vpop.f32.mrf.mxu0
    %v1317 = vadd.f32 0.0, %v1316
    %1318 = vdwg.mxu0
    %v1319 = vmul.f32 %v1317, %v1317
    %vm1320 = vcmask 1040384
    %v1321 = vsel %vm1320, %v1319, 0.0
    %1322 = vadd.xlane.f32.xlu0 %v1321
    %v1323 = vpop.xlane.xlu0 %1322
    %v1324 = vrsqrt.pop %v1323
    %v1325 = vmul.f32 %v1324, %v1323
    %v1326 = vmul.f32 %v1325, %v1324
    %v1327 = vmul.f32 0.5, %v1326
    %v1328 = vsub.f32 1.5, %v1327
    %v1329 = vmul.f32 %v1324, %v1328
    %v1330 = vmul.f32 %v1323, %v1329
    %vm1331 = vcmp.eq.f32.partialorder %v1323, inf
    %v1332 = vsel %vm1331, %v1323, %v1330
    %vm1333 = vcmp.eq.f32.partialorder %v1323, 0.0
    %v1334 = vand.u32 %v1323, 2147483648
    %v1335 = vsel %vm1333, %v1334, %v1332
    %v1336 = vadd.f32 %v1335, 1e-06
    %v1337 = vrcp.pop %v1336
    %v1338 = vmul.f32 %v1317, %v1337
    %1339 = vmatpush.msra.mxu0 %v1298
    %1340 = vmatpush.msra.mxu0 %v1297
    %1341 = vmatpush.msra.mxu0 %v1296
    %1342 = vmatpush.msra.mxu0 %v1295
    %1343 = vmatpush.msra.mxu0 %v1294
    %1344 = vmatpush.msra.mxu0 %v1293
    %1345 = vmatpush.msra.mxu0 %v1292
    %1346 = vmatpush.msra.mxu0 %v1291
    %1347 = vmatpush.msra.mxu0 %v1290
    %1348 = vmatpush.msra.mxu0 %v1289
    %1349 = vmatpush.msra.mxu0 %v1288
    %1350 = vmatpush.msra.mxu0 %v1287
    %1351 = vmatpush.msra.mxu0 %v1286
    %1352 = vmatpush.msra.mxu0 %v1285
    %1353 = vmatpush.msra.mxu0 %v1284
    %1354 = vmatpush.msra.mxu0 %v1283
    %1355 = vmatmul.f32.gmra.mxu0 %v1338
    %v1356 = vpop.f32.mrf.mxu0
    %v1357 = vadd.f32 0.0, %v1356
    %1358 = vdwg.mxu0
    %v1359 = vmul.f32 %v1357, %v1357
    %v1360 = vsel %vm1320, %v1359, 0.0
    %1361 = vadd.xlane.f32.xlu0 %v1360
    %v1362 = vpop.xlane.xlu0 %1361
    %v1363 = vrsqrt.pop %v1362
    %v1364 = vmul.f32 %v1363, %v1362
    %v1365 = vmul.f32 %v1364, %v1363
    %v1366 = vmul.f32 0.5, %v1365
    %v1367 = vsub.f32 1.5, %v1366
    %v1368 = vmul.f32 %v1363, %v1367
    %v1369 = vmul.f32 %v1362, %v1368
    %vm1370 = vcmp.eq.f32.partialorder %v1362, inf
    %v1371 = vsel %vm1370, %v1362, %v1369
    %vm1372 = vcmp.eq.f32.partialorder %v1362, 0.0
    %v1373 = vand.u32 %v1362, 2147483648
    %v1374 = vsel %vm1372, %v1373, %v1371
    %v1375 = vadd.f32 %v1374, 1e-06
    %v1376 = vrcp.pop %v1375
    %v1377 = vmul.f32 %v1357, %v1376
    %1378 = vmatpush.msra.mxu0 %v1298
    %1379 = vmatpush.msra.mxu0 %v1297
    %1380 = vmatpush.msra.mxu0 %v1296
    %1381 = vmatpush.msra.mxu0 %v1295
    %1382 = vmatpush.msra.mxu0 %v1294
    %1383 = vmatpush.msra.mxu0 %v1293
    %1384 = vmatpush.msra.mxu0 %v1292
    %1385 = vmatpush.msra.mxu0 %v1291
    %1386 = vmatpush.msra.mxu0 %v1290
    %1387 = vmatpush.msra.mxu0 %v1289
    %1388 = vmatpush.msra.mxu0 %v1288
    %1389 = vmatpush.msra.mxu0 %v1287
    %1390 = vmatpush.msra.mxu0 %v1286
    %1391 = vmatpush.msra.mxu0 %v1285
    %1392 = vmatpush.msra.mxu0 %v1284
    %1393 = vmatpush.msra.mxu0 %v1283
    %1394 = vmatmul.f32.gmra.mxu0 %v1377
    %v1395 = vpop.f32.mrf.mxu0
    %v1396 = vadd.f32 0.0, %v1395
    %1397 = vdwg.mxu0
    %v1398 = vmul.f32 %v1396, %v1396
    %v1399 = vsel %vm1320, %v1398, 0.0
    %1400 = vadd.xlane.f32.xlu0 %v1399
    %v1401 = vpop.xlane.xlu0 %1400
    %v1402 = vrsqrt.pop %v1401
    %v1403 = vmul.f32 %v1402, %v1401
    %v1404 = vmul.f32 %v1403, %v1402
    %v1405 = vmul.f32 0.5, %v1404
    %v1406 = vsub.f32 1.5, %v1405
    %v1407 = vmul.f32 %v1402, %v1406
    %v1408 = vmul.f32 %v1401, %v1407
    %vm1409 = vcmp.eq.f32.partialorder %v1401, inf
    %v1410 = vsel %vm1409, %v1401, %v1408
    %vm1411 = vcmp.eq.f32.partialorder %v1401, 0.0
    %v1412 = vand.u32 %v1401, 2147483648
    %v1413 = vsel %vm1411, %v1412, %v1410
    %v1414 = vadd.f32 %v1413, 1e-06
    %v1415 = vrcp.pop %v1414
    %v1416 = vmul.f32 %v1396, %v1415
    %1417 = vmatpush.msra.mxu0 %v1298
    %1418 = vmatpush.msra.mxu0 %v1297
    %1419 = vmatpush.msra.mxu0 %v1296
    %1420 = vmatpush.msra.mxu0 %v1295
    %1421 = vmatpush.msra.mxu0 %v1294
    %1422 = vmatpush.msra.mxu0 %v1293
    %1423 = vmatpush.msra.mxu0 %v1292
    %1424 = vmatpush.msra.mxu0 %v1291
    %1425 = vmatpush.msra.mxu0 %v1290
    %1426 = vmatpush.msra.mxu0 %v1289
    %1427 = vmatpush.msra.mxu0 %v1288
    %1428 = vmatpush.msra.mxu0 %v1287
    %1429 = vmatpush.msra.mxu0 %v1286
    %1430 = vmatpush.msra.mxu0 %v1285
    %1431 = vmatpush.msra.mxu0 %v1284
    %1432 = vmatpush.msra.mxu0 %v1283
    %1433 = vmatmul.f32.gmra.mxu0 %v1416
    %v1434 = vpop.f32.mrf.mxu0
    %v1435 = vadd.f32 0.0, %v1434
    %1436 = vdwg.mxu0
    %v1437 = vmul.f32 %v1435, %v1435
    %v1438 = vsel %vm1320, %v1437, 0.0
    %1439 = vadd.xlane.f32.xlu0 %v1438
    %v1440 = vpop.xlane.xlu0 %1439
    %v1441 = vrsqrt.pop %v1440
    %v1442 = vmul.f32 %v1441, %v1440
    %v1443 = vmul.f32 %v1442, %v1441
    %v1444 = vmul.f32 0.5, %v1443
    %v1445 = vsub.f32 1.5, %v1444
    %v1446 = vmul.f32 %v1441, %v1445
    %v1447 = vmul.f32 %v1440, %v1446
    %vm1448 = vcmp.eq.f32.partialorder %v1440, inf
    %v1449 = vsel %vm1448, %v1440, %v1447
    %vm1450 = vcmp.eq.f32.partialorder %v1440, 0.0
    %v1451 = vand.u32 %v1440, 2147483648
    %v1452 = vsel %vm1450, %v1451, %v1449
    %v1453 = vadd.f32 %v1452, 1e-06
    %v1454 = vrcp.pop %v1453
    %v1455 = vmul.f32 %v1435, %v1454
    %1456 = vmatpush.msra.mxu0 %v1298
    %1457 = vmatpush.msra.mxu0 %v1297
    %1458 = vmatpush.msra.mxu0 %v1296
    %1459 = vmatpush.msra.mxu0 %v1295
    %1460 = vmatpush.msra.mxu0 %v1294
    %1461 = vmatpush.msra.mxu0 %v1293
    %1462 = vmatpush.msra.mxu0 %v1292
    %1463 = vmatpush.msra.mxu0 %v1291
    %1464 = vmatpush.msra.mxu0 %v1290
    %1465 = vmatpush.msra.mxu0 %v1289
    %1466 = vmatpush.msra.mxu0 %v1288
    %1467 = vmatpush.msra.mxu0 %v1287
    %1468 = vmatpush.msra.mxu0 %v1286
    %1469 = vmatpush.msra.mxu0 %v1285
    %1470 = vmatpush.msra.mxu0 %v1284
    %1471 = vmatpush.msra.mxu0 %v1283
    %1472 = vmatmul.f32.gmra.mxu0 %v1455
    %v1473 = vpop.f32.mrf.mxu0
    %v1474 = vadd.f32 0.0, %v1473
    %1475 = vdwg.mxu0
    %v1476 = vmul.f32 %v1474, %v1474
    %v1477 = vsel %vm1320, %v1476, 0.0
    %1478 = vadd.xlane.f32.xlu0 %v1477
    %v1479 = vpop.xlane.xlu0 %1478
    %v1480 = vrsqrt.pop %v1479
    %v1481 = vmul.f32 %v1480, %v1479
    %v1482 = vmul.f32 %v1481, %v1480
    %v1483 = vmul.f32 0.5, %v1482
    %v1484 = vsub.f32 1.5, %v1483
    %v1485 = vmul.f32 %v1480, %v1484
    %v1486 = vmul.f32 %v1479, %v1485
    %vm1487 = vcmp.eq.f32.partialorder %v1479, inf
    %v1488 = vsel %vm1487, %v1479, %v1486
    %vm1489 = vcmp.eq.f32.partialorder %v1479, 0.0
    %v1490 = vand.u32 %v1479, 2147483648
    %v1491 = vsel %vm1489, %v1490, %v1488
    %v1492 = vadd.f32 %v1491, 1e-06
    %v1493 = vrcp.pop %v1492
    %v1494 = vmul.f32 %v1474, %v1493
    %1495 = vmatpush.msra.mxu0 %v1298
    %1496 = vmatpush.msra.mxu0 %v1297
    %1497 = vmatpush.msra.mxu0 %v1296
    %1498 = vmatpush.msra.mxu0 %v1295
    %1499 = vmatpush.msra.mxu0 %v1294
    %1500 = vmatpush.msra.mxu0 %v1293
    %1501 = vmatpush.msra.mxu0 %v1292
    %1502 = vmatpush.msra.mxu0 %v1291
    %1503 = vmatpush.msra.mxu0 %v1290
    %1504 = vmatpush.msra.mxu0 %v1289
    %1505 = vmatpush.msra.mxu0 %v1288
    %1506 = vmatpush.msra.mxu0 %v1287
    %1507 = vmatpush.msra.mxu0 %v1286
    %1508 = vmatpush.msra.mxu0 %v1285
    %1509 = vmatpush.msra.mxu0 %v1284
    %1510 = vmatpush.msra.mxu0 %v1283
    %1511 = vmatmul.f32.gmra.mxu0 %v1494
    %v1512 = vpop.f32.mrf.mxu0
    %v1513 = vadd.f32 0.0, %v1512
    %1514 = vdwg.mxu0
    %v1515 = vmul.f32 %v1513, %v1513
    %v1516 = vsel %vm1320, %v1515, 0.0
    %1517 = vadd.xlane.f32.xlu0 %v1516
    %v1518 = vpop.xlane.xlu0 %1517
    %v1519 = vrsqrt.pop %v1518
    %v1520 = vmul.f32 %v1519, %v1518
    %v1521 = vmul.f32 %v1520, %v1519
    %v1522 = vmul.f32 0.5, %v1521
    %v1523 = vsub.f32 1.5, %v1522
    %v1524 = vmul.f32 %v1519, %v1523
    %v1525 = vmul.f32 %v1518, %v1524
    %vm1526 = vcmp.eq.f32.partialorder %v1518, inf
    %v1527 = vsel %vm1526, %v1518, %v1525
    %vm1528 = vcmp.eq.f32.partialorder %v1518, 0.0
    %v1529 = vand.u32 %v1518, 2147483648
    %v1530 = vsel %vm1528, %v1529, %v1527
    %v1531 = vadd.f32 %v1530, 1e-06
    %v1532 = vrcp.pop %v1531
    %v1533 = vmul.f32 %v1513, %v1532
    %1534 = vmatpush.msra.mxu0 %v1298
    %1535 = vmatpush.msra.mxu0 %v1297
    %1536 = vmatpush.msra.mxu0 %v1296
    %1537 = vmatpush.msra.mxu0 %v1295
    %1538 = vmatpush.msra.mxu0 %v1294
    %1539 = vmatpush.msra.mxu0 %v1293
    %1540 = vmatpush.msra.mxu0 %v1292
    %1541 = vmatpush.msra.mxu0 %v1291
    %1542 = vmatpush.msra.mxu0 %v1290
    %1543 = vmatpush.msra.mxu0 %v1289
    %1544 = vmatpush.msra.mxu0 %v1288
    %1545 = vmatpush.msra.mxu0 %v1287
    %1546 = vmatpush.msra.mxu0 %v1286
    %1547 = vmatpush.msra.mxu0 %v1285
    %1548 = vmatpush.msra.mxu0 %v1284
    %1549 = vmatpush.msra.mxu0 %v1283
    %1550 = vmatmul.f32.gmra.mxu0 %v1533
    %v1551 = vpop.f32.mrf.mxu0
    %v1552 = vadd.f32 0.0, %v1551
    %1553 = vdwg.mxu0
    %v1554 = vmul.f32 %v1552, %v1552
    %v1555 = vsel %vm1320, %v1554, 0.0
    %1556 = vadd.xlane.f32.xlu0 %v1555
    %v1557 = vpop.xlane.xlu0 %1556
    %v1558 = vrsqrt.pop %v1557
    %v1559 = vmul.f32 %v1558, %v1557
    %v1560 = vmul.f32 %v1559, %v1558
    %v1561 = vmul.f32 0.5, %v1560
    %v1562 = vsub.f32 1.5, %v1561
    %v1563 = vmul.f32 %v1558, %v1562
    %v1564 = vmul.f32 %v1557, %v1563
    %vm1565 = vcmp.eq.f32.partialorder %v1557, inf
    %v1566 = vsel %vm1565, %v1557, %v1564
    %vm1567 = vcmp.eq.f32.partialorder %v1557, 0.0
    %v1568 = vand.u32 %v1557, 2147483648
    %v1569 = vsel %vm1567, %v1568, %v1566
    %v1570 = vadd.f32 %v1569, 1e-06
    %v1571 = vrcp.pop %v1570
    %v1572 = vmul.f32 %v1552, %v1571
    %1573 = vmatpush.msra.mxu0 %v1298
    %1574 = vmatpush.msra.mxu0 %v1297
    %1575 = vmatpush.msra.mxu0 %v1296
    %1576 = vmatpush.msra.mxu0 %v1295
    %1577 = vmatpush.msra.mxu0 %v1294
    %1578 = vmatpush.msra.mxu0 %v1293
    %1579 = vmatpush.msra.mxu0 %v1292
    %1580 = vmatpush.msra.mxu0 %v1291
    %1581 = vmatpush.msra.mxu0 %v1290
    %1582 = vmatpush.msra.mxu0 %v1289
    %1583 = vmatpush.msra.mxu0 %v1288
    %1584 = vmatpush.msra.mxu0 %v1287
    %1585 = vmatpush.msra.mxu0 %v1286
    %1586 = vmatpush.msra.mxu0 %v1285
    %1587 = vmatpush.msra.mxu0 %v1284
    %1588 = vmatpush.msra.mxu0 %v1283
    %1589 = vmatmul.f32.gmra.mxu0 %v1572
    %v1590 = vpop.f32.mrf.mxu0
    %v1591 = vadd.f32 0.0, %v1590
    %1592 = vdwg.mxu0
    %v1593 = vmul.f32 %v1591, %v1591
    %v1594 = vsel %vm1320, %v1593, 0.0
    %1595 = vadd.xlane.f32.xlu0 %v1594
    %v1596 = vpop.xlane.xlu0 %1595
    %v1597 = vrsqrt.pop %v1596
    %v1598 = vmul.f32 %v1597, %v1596
    %v1599 = vmul.f32 %v1598, %v1597
    %v1600 = vmul.f32 0.5, %v1599
    %v1601 = vsub.f32 1.5, %v1600
    %v1602 = vmul.f32 %v1597, %v1601
    %v1603 = vmul.f32 %v1596, %v1602
    %vm1604 = vcmp.eq.f32.partialorder %v1596, inf
    %v1605 = vsel %vm1604, %v1596, %v1603
    %vm1606 = vcmp.eq.f32.partialorder %v1596, 0.0
    %v1607 = vand.u32 %v1596, 2147483648
    %v1608 = vsel %vm1606, %v1607, %v1605
    %v1609 = vadd.f32 %v1608, 1e-06
    %v1610 = vrcp.pop %v1609
    %v1611 = vmul.f32 %v1591, %v1610
    %1612 = vmatpush.msra.mxu0 %v1298
    %1613 = vmatpush.msra.mxu0 %v1297
    %1614 = vmatpush.msra.mxu0 %v1296
    %1615 = vmatpush.msra.mxu0 %v1295
    %1616 = vmatpush.msra.mxu0 %v1294
    %1617 = vmatpush.msra.mxu0 %v1293
    %1618 = vmatpush.msra.mxu0 %v1292
    %1619 = vmatpush.msra.mxu0 %v1291
    %1620 = vmatpush.msra.mxu0 %v1290
    %1621 = vmatpush.msra.mxu0 %v1289
    %1622 = vmatpush.msra.mxu0 %v1288
    %1623 = vmatpush.msra.mxu0 %v1287
    %1624 = vmatpush.msra.mxu0 %v1286
    %1625 = vmatpush.msra.mxu0 %v1285
    %1626 = vmatpush.msra.mxu0 %v1284
    %1627 = vmatpush.msra.mxu0 %v1283
    %1628 = vmatmul.f32.gmra.mxu0 %v1611
    %v1629 = vpop.f32.mrf.mxu0
    %v1630 = vadd.f32 0.0, %v1629
    %1631 = vdwg.mxu0
    %v1632 = vmul.f32 %v1630, %v1630
    %v1633 = vsel %vm1320, %v1632, 0.0
    %1634 = vadd.xlane.f32.xlu0 %v1633
    %v1635 = vpop.xlane.xlu0 %1634
    %v1636 = vrsqrt.pop %v1635
    %v1637 = vmul.f32 %v1636, %v1635
    %v1638 = vmul.f32 %v1637, %v1636
    %v1639 = vmul.f32 0.5, %v1638
    %v1640 = vsub.f32 1.5, %v1639
    %v1641 = vmul.f32 %v1636, %v1640
    %v1642 = vmul.f32 %v1635, %v1641
    %vm1643 = vcmp.eq.f32.partialorder %v1635, inf
    %v1644 = vsel %vm1643, %v1635, %v1642
    %vm1645 = vcmp.eq.f32.partialorder %v1635, 0.0
    %v1646 = vand.u32 %v1635, 2147483648
    %v1647 = vsel %vm1645, %v1646, %v1644
    %v1648 = vadd.f32 %v1647, 1e-06
    %v1649 = vrcp.pop %v1648
    %v1650 = vmul.f32 %v1630, %v1649
    %1651 = vmatpush.msra.mxu0 %v1298
    %1652 = vmatpush.msra.mxu0 %v1297
    %1653 = vmatpush.msra.mxu0 %v1296
    %1654 = vmatpush.msra.mxu0 %v1295
    %1655 = vmatpush.msra.mxu0 %v1294
    %1656 = vmatpush.msra.mxu0 %v1293
    %1657 = vmatpush.msra.mxu0 %v1292
    %1658 = vmatpush.msra.mxu0 %v1291
    %1659 = vmatpush.msra.mxu0 %v1290
    %1660 = vmatpush.msra.mxu0 %v1289
    %1661 = vmatpush.msra.mxu0 %v1288
    %1662 = vmatpush.msra.mxu0 %v1287
    %1663 = vmatpush.msra.mxu0 %v1286
    %1664 = vmatpush.msra.mxu0 %v1285
    %1665 = vmatpush.msra.mxu0 %v1284
    %1666 = vmatpush.msra.mxu0 %v1283
    %1667 = vmatmul.f32.gmra.mxu0 %v1650
    %v1668 = vpop.f32.mrf.mxu0
    %v1669 = vadd.f32 0.0, %v1668
    %1670 = vdwg.mxu0
    %v1671 = vmul.f32 %v1669, %v1669
    %v1672 = vsel %vm1320, %v1671, 0.0
    %1673 = vadd.xlane.f32.xlu0 %v1672
    %v1674 = vpop.xlane.xlu0 %1673
    %v1675 = vrsqrt.pop %v1674
    %v1676 = vmul.f32 %v1675, %v1674
    %v1677 = vmul.f32 %v1676, %v1675
    %v1678 = vmul.f32 0.5, %v1677
    %v1679 = vsub.f32 1.5, %v1678
    %v1680 = vmul.f32 %v1675, %v1679
    %v1681 = vmul.f32 %v1674, %v1680
    %vm1682 = vcmp.eq.f32.partialorder %v1674, inf
    %v1683 = vsel %vm1682, %v1674, %v1681
    %vm1684 = vcmp.eq.f32.partialorder %v1674, 0.0
    %v1685 = vand.u32 %v1674, 2147483648
    %v1686 = vsel %vm1684, %v1685, %v1683
    %v1687 = vadd.f32 %v1686, 1e-06
    %v1688 = vrcp.pop %v1687
    %v1689 = vmul.f32 %v1687, %v1688
    %v1690 = vsub.f32 1.0, %v1689
    %v1691 = vmul.f32 %v1688, %v1690
    %v1692 = vadd.f32 %v1688, %v1691
    %vm1693 = vweird.f32 %v1687
    %vm1694 = vweird.f32 %v1688
    %vm1695 = vmor %vm1693, %vm1694
    %v1696 = vsel %vm1695, %v1688, %v1692
    %v1697 = vand.u32 2147483647, %v1687
    %vm1698 = vcmp.eq.f32.partialorder %v1697, 8.507059e+37
    %v1699 = vand.u32 %v1687, 2147483648
    %v1700 = vor.u32 1.1754944e-38, %v1699
    %v1701 = vsel %vm1698, %v1700, %v1696
    %v1702 = vmul.f32 %v1669, %v1701
    %1703 = vst [vmem:[#allocation2] sm:$0x1] %v1702
    // Predicated region
    $region10: #{tpu_custom_call.1} parent=1 // pred_check
      _
    $region11: #{tpu_custom_call.1} parent=1 // pred_check_branch
      %1705 = sbr.rel (0) target = $region13
    $region12: #{tpu_custom_call.1} parent=1 // pred_region
      %1707 = vsyncadd [#allocation3], 0
      %s1709 = sshll.u32 [#allocation2], 4
      %s1710 = int_to_ptr.vmem [resolvable:$true] %s1709
      %s1711 = sshll.u32 %s2, 4
      %s1712 = int_to_ptr.hbm [resolvable:$true] %s1711
      %1714 = dma.vmem_to_hbm [thread:$0]  %s1710, 16, %s1712, [#allocation3]
    $region13: #{tpu_custom_call.1} parent=1 // pred_fallthru
      _
    // Predicated region
    $region14: #{tpu_custom_call.1} parent=1 // pred_check
      _
    $region15: #{tpu_custom_call.1} parent=1 // pred_check_branch
      %1716 = sbr.rel (0) target = $region17
    $region16: #{tpu_custom_call.1} parent=1 // pred_region
      %1718 = dma.done [#allocation3], 16
    $region17: #{tpu_custom_call.1} parent=1 // pred_fallthru
      _
    %1719 = vsyncpa [#allocation3], 1

</llo_original>
